<compile_context>
chip_gen: v6e
topology: v6e:2x2x1
jax: 0.10.0
libtpu: 0.0.40
codegen_flags: <defaults>
</compile_context>

<pallas_src>
import math

import jax
import jax.numpy as jnp
from jax import lax
from jax.experimental import pallas as pl
from jax.experimental.pallas import tpu as pltpu


# ---------------------------------------------------------------------------
# Small helpers
# ---------------------------------------------------------------------------
def _round_up(x, m):
    return ((x + m - 1) // m) * m


def _erf_poly(x):
    """Abramowitz & Stegun 7.1.26 erf approximation (|err| < 1.5e-7).

    Uses only mul/add/div/exp/where so it lowers on every TPU generation.
    """
    p = 0.3275911
    a1, a2, a3, a4, a5 = (0.254829592, -0.284496736, 1.421413741,
                          -1.453152027, 1.061405429)
    ax = jnp.abs(x)
    t = 1.0 / (1.0 + p * ax)
    poly = ((((a5 * t + a4) * t + a3) * t + a2) * t + a1) * t
    y = 1.0 - poly * jnp.exp(-ax * ax)
    return jnp.where(x >= 0, y, -y)


def _gelu_exact(x):
    # F.gelu default == exact (erf) GELU.
    return 0.5 * x * (1.0 + _erf_poly(x * 0.7071067811865475))


# ---------------------------------------------------------------------------
# Pallas kernels
# ---------------------------------------------------------------------------
def _single_k_kernel(x_ref, w_ref, scale_ref, shift_ref, o_ref):
    """K fits one tile: one MXU dot, fused BN affine + GELU, bf16 store."""
    acc = jnp.dot(x_ref[...], w_ref[...], preferred_element_type=jnp.float32)
    y = acc * scale_ref[...] + shift_ref[...]
    o_ref[...] = _gelu_exact(y).astype(o_ref.dtype)


def _make_multi_k_kernel(K, tk):
    """K is a reduction grid axis (last); f32 VMEM accumulator."""
    ragged = (K % tk) != 0

    def kernel(x_ref, w_ref, scale_ref, shift_ref, o_ref, acc_ref):
        k = pl.program_id(2)

        @pl.when(k == 0)
        def _():
            acc_ref[...] = jnp.zeros_like(acc_ref)

        x = x_ref[...]
        if ragged:
            # X is NOT padded along K (saves a full HBM pass over the biggest
            # tensor); mask the out-of-bounds columns of the last (partial)
            # K block so stale VMEM never enters the reduction. W *is*
            # zero-padded along K, so masked cols meet true zeros.
            valid = K - k * tk
            cols = lax.broadcasted_iota(jnp.int32, x.shape, dimension=1)
            x = jnp.where(cols < valid, x, jnp.zeros_like(x))

        acc_ref[...] += jnp.dot(x, w_ref[...],
                                preferred_element_type=jnp.float32)

        @pl.when(k == pl.num_programs(2) - 1)
        def _():
            y = acc_ref[...] * scale_ref[...] + shift_ref[...]
            o_ref[...] = _gelu_exact(y).astype(o_ref.dtype)

    return kernel


# ---------------------------------------------------------------------------
# Tile selection (VMEM-budget aware, v7x-safe) + pallas_call wrapper
# ---------------------------------------------------------------------------
_VMEM_BUDGET = 40 * 1024 * 1024   # double-buffered working-set target
_VMEM_LIMIT = 48 * 1024 * 1024    # < v7x 64 MiB physical; < v5e/v6e physical


def _tile_footprint(tm, tk, tn, single_k):
    x = 2 * tm * tk * 2           # double-buffered bf16 X tile
    w = 2 * tk * tn * 2           # double-buffered bf16 W tile
    o = 2 * tm * tn * 2           # double-buffered bf16 out tile
    s = 2 * 2 * tn * 4            # scale + shift (tiny)
    acc = 0 if single_k else tm * tn * 4
    return x + w + o + s + acc


def _choose_tiles(M, K, Cout, *, max_tm=2048, max_tn=512, max_tk=2048):
    tn = min(max_tn, _round_up(Cout, 128))
    tm = min(max_tm, _round_up(M, 16))
    single_k = K <= max_tk
    tk = K if single_k else max_tk

    # Keep the double-buffered footprint inside the budget (rarely triggers
    # with these maxima, but guards pathological Cin*kd*kh*kw).
    while _tile_footprint(tm, tk, tn, single_k) > _VMEM_BUDGET and tm > 256:
        tm //= 2
    if _tile_footprint(tm, tk, tn, single_k) > _VMEM_BUDGET and single_k:
        single_k = False
        tk = min(max_tk, _round_up(K, 128))
    while _tile_footprint(tm, tk, tn, single_k) > _VMEM_BUDGET and tk > 512:
        tk = _round_up(tk // 2, 128)

    # Make sure both TensorCores get work on multi-TC / megacore parts.
    c_pad = _round_up(Cout, tn)
    if pl.cdiv(M, tm) * (c_pad // tn) < 2 and tm >= 32:
        tm //= 2
    return tm, tk, tn, single_k


def _fused_matmul_bn_gelu(x_mat, w_mat, bn_scale, bn_shift):
    """x_mat: [M, K], w_mat: [K, Cout] -> gelu((x@w)*scale + shift).

    Returns a bf16 [M, C_pad] channels-last matrix (C_pad >= Cout)."""
    M, K = x_mat.shape
    Cout = w_mat.shape[1]

    tm, tk, tn, single_k = _choose_tiles(M, K, Cout)
    C_pad = _round_up(Cout, tn)
    K_w = K if single_k else _round_up(K, tk)

    # Only the small tensors are padded; X is used as-is (no extra HBM pass).
    x_bf = x_mat.astype(jnp.bfloat16)
    w_bf = jnp.pad(w_mat.astype(jnp.bfloat16),
                   ((0, K_w - K), (0, C_pad - Cout)))
    scale2d = jnp.pad(bn_scale.astype(jnp.float32),
                      (0, C_pad - Cout)).reshape(1, C_pad)
    shift2d = jnp.pad(bn_shift.astype(jnp.float32),
                      (0, C_pad - Cout)).reshape(1, C_pad)

    mi = pl.cdiv(M, tm)
    nj = C_pad // tn

    if single_k:
        out = pl.pallas_call(
            _single_k_kernel,
            out_shape=jax.ShapeDtypeStruct((M, C_pad), jnp.bfloat16),
            grid_spec=pltpu.PrefetchScalarGridSpec(
                num_scalar_prefetch=0,
                grid=(mi, nj),
                in_specs=[
                    pl.BlockSpec((tm, K), lambda i, j: (i, 0)),   # X tile
                    pl.BlockSpec((K, tn), lambda i, j: (0, j)),   # W tile
                    pl.BlockSpec((1, tn), lambda i, j: (0, j)),   # bn scale
                    pl.BlockSpec((1, tn), lambda i, j: (0, j)),   # bn shift
                ],
                out_specs=pl.BlockSpec((tm, tn), lambda i, j: (i, j)),
            ),
            compiler_params=pltpu.CompilerParams(
                dimension_semantics=("parallel", "parallel"),
                vmem_limit_bytes=_VMEM_LIMIT,
            ),
        )(x_bf, w_bf, scale2d, shift2d)
    else:
        kk = K_w // tk
        out = pl.pallas_call(
            _make_multi_k_kernel(K, tk),
            out_shape=jax.ShapeDtypeStruct((M, C_pad), jnp.bfloat16),
            grid_spec=pltpu.PrefetchScalarGridSpec(
                num_scalar_prefetch=0,
                grid=(mi, nj, kk),
                in_specs=[
                    pl.BlockSpec((tm, tk), lambda i, j, k: (i, k)),
                    pl.BlockSpec((tk, tn), lambda i, j, k: (k, j)),
                    pl.BlockSpec((1, tn), lambda i, j, k: (0, j)),
                    pl.BlockSpec((1, tn), lambda i, j, k: (0, j)),
                ],
                out_specs=pl.BlockSpec((tm, tn), lambda i, j, k: (i, j)),
                scratch_shapes=[pltpu.VMEM((tm, tn), jnp.float32)],
            ),
            compiler_params=pltpu.CompilerParams(
                dimension_semantics=("parallel", "parallel", "arbitrary"),
                vmem_limit_bytes=_VMEM_LIMIT,
            ),
        )(x_bf, w_bf, scale2d, shift2d)

    return out


# ---------------------------------------------------------------------------
# Glue: patch extraction (channels-last, bf16). 1x1x1 kernels need NO im2col.
# ---------------------------------------------------------------------------
def _to_patches(x, kernel_shape, stride, padding):
    """NCDHW input -> (bf16 [M, K] patch matrix, (N, Do, Ho, Wo))."""
    kd, kh, kw = kernel_shape
    sd, sh, sw = stride
    p = padding
    x = x.astype(jnp.bfloat16)
    if p:
        x = jnp.pad(x, ((0, 0), (0, 0), (p, p), (p, p), (p, p)))
    N, C, D, H, W = x.shape
    Do = (D - kd) // sd + 1
    Ho = (H - kh) // sh + 1
    Wo = (W - kw) // sw + 1

    if (kd, kh, kw) == (1, 1, 1):
        # Fast path: the channels-last reshape IS the patch matrix.
        xs = x[:, :, ::sd, ::sh, ::sw]
        pmat = jnp.transpose(xs, (0, 2, 3, 4, 1)).reshape(N * Do * Ho * Wo, C)
        return pmat, (N, Do, Ho, Wo)

    # TODO(synk): fuse this gather into the Pallas kernel (kd*kh*kw offsets on
    # the reduction axis, manual DMA of shifted NDHWC windows) to remove the
    # remaining kd*kh*kw x HBM expansion for k>1 convs.
    patches = []
    for i in range(kd):
        for j in range(kh):
            for k in range(kw):
                patches.append(
                    x[:, :, i:i + Do * sd:sd, j:j + Ho * sh:sh, k:k + Wo * sw:sw])
    pstack = jnp.stack(patches, axis=2)          # [N, C, kd*kh*kw, Do, Ho, Wo]
    pmat = jnp.transpose(pstack, (0, 3, 4, 5, 1, 2)).reshape(
        N * Do * Ho * Wo, C * kd * kh * kw)      # K ordered as (C, kd, kh, kw)
    return pmat, (N, Do, Ho, Wo)


# ---------------------------------------------------------------------------
# Unit3D module (forward = conv3d -> batchnorm(eval) -> gelu)
# ---------------------------------------------------------------------------
class Unit3DPallas:
    def __init__(self, in_channels, output_channels, kernel_shape=(1, 1, 1),
                 stride=(1, 1, 1), padding=0, use_batch_norm=True,
                 use_bias=False, eps=1e-3, channels_last_output=False,
                 key=None):
        self.in_channels = in_channels
        self.out_channels = output_channels
        self.kernel_shape = tuple(kernel_shape)
        self.stride = tuple(stride)
        self.padding = padding
        self.use_batch_norm = use_batch_norm
        self.use_bias = use_bias
        self.eps = eps
        self.channels_last_output = channels_last_output

        key = jax.random.PRNGKey(0) if key is None else key
        kw_, kb_, kg_, kbeta_, kmean_, kvar_ = jax.random.split(key, 6)

        # Conv3d weight: [Cout, Cin, kd, kh, kw]
        fan_in = in_channels * math.prod(kernel_shape)
        bound = 1.0 / math.sqrt(fan_in)
        self.weight = jax.random.uniform(
            kw_, (output_channels, in_channels) + self.kernel_shape,
            minval=-bound, maxval=bound, dtype=jnp.float32)
        self.bias = (
            jax.random.uniform(kb_, (output_channels,), minval=-bound,
                               maxval=bound, dtype=jnp.float32)
            if use_bias else None)

        if use_batch_norm:
            # BatchNorm3d in eval mode: running statistics + affine params.
            self.gamma = 1.0 + 0.1 * jax.random.normal(
                kg_, (output_channels,), dtype=jnp.float32)
            self.beta = 0.1 * jax.random.normal(
                kbeta_, (output_channels,), dtype=jnp.float32)
            self.running_mean = 0.1 * jax.random.normal(
                kmean_, (output_channels,), dtype=jnp.float32)
            self.running_var = jax.random.uniform(
                kvar_, (output_channels,), minval=0.5, maxval=1.5,
                dtype=jnp.float32)

    def __call__(self, x):
        # x: [N, Cin, D, H, W]  (NCDHW, same as PyTorch)
        pmat, (N, Do, Ho, Wo) = _to_patches(
            x, self.kernel_shape, self.stride, self.padding)

        # Flattened conv weight: [K, Cout], K = Cin*kd*kh*kw (patch order).
        w_mat = self.weight.reshape(self.out_channels, -1).T

        # Fold conv bias + BatchNorm(eval) into a per-channel affine.
        if self.use_batch_norm:
            inv_std = 1.0 / jnp.sqrt(self.running_var + self.eps)
            scale = self.gamma * inv_std
            shift = self.beta - self.running_mean * scale
            if self.use_bias:
                shift = shift + self.bias * scale
        else:
            scale = jnp.ones((self.out_channels,), jnp.float32)
            shift = (self.bias if self.use_bias
                     else jnp.zeros((self.out_channels,), jnp.float32))

        y_mat = _fused_matmul_bn_gelu(pmat, w_mat, scale, shift)  # bf16

        # Channels-last result; slice off lane padding. Output stays bf16
        # (precision contract) and the optional NCDHW transpose is in bf16.
        y = y_mat[:, :self.out_channels].reshape(
            N, Do, Ho, Wo, self.out_channels)
        if self.channels_last_output:
            return y
        return jnp.transpose(y, (0, 4, 1, 2, 3))   # NCDHW


# ---------------------------------------------------------------------------
# Reference (pure JAX, f32) for sanity checking
# ---------------------------------------------------------------------------
def _reference(module, x):
    p = module.padding
    y = jax.lax.conv_general_dilated(
        x, module.weight, window_strides=module.stride,
        padding=[(p, p)] * 3,
        dimension_numbers=("NCDHW", "OIDHW", "NCDHW"))
    if module.use_bias:
        y = y + module.bias[None, :, None, None, None]
    if module.use_batch_norm:
        inv_std = 1.0 / jnp.sqrt(module.running_var + module.eps)
        y = ((y - module.running_mean[None, :, None, None, None])
             * inv_std[None, :, None, None, None]
             * module.gamma[None, :, None, None, None]
             + module.beta[None, :, None, None, None])
    return jax.nn.gelu(y, approximate=False)


if __name__ == "__main__":
    key = jax.random.PRNGKey(0)
    k1, k2, k3, k4 = jax.random.split(key, 4)

    # --- Case 1: 3x3x3 conv, stride 1, padding 1 (im2col path) -------------
    N, Cin, D, H, W = 2, 4, 8, 8, 8
    Cout = 8
    x = jax.random.normal(k1, (N, Cin, D, H, W), dtype=jnp.float32)
    unit = Unit3DPallas(in_channels=Cin, output_channels=Cout,
                        kernel_shape=(3, 3, 3), stride=(1, 1, 1),
                        padding=1, use_batch_norm=True, use_bias=False,
                        key=k2)
    out = jax.block_until_ready(unit(x))
    ref = jax.block_until_ready(_reference(unit, x))
    assert out.shape == ref.shape == (N, Cout, D, H, W), (out.shape, ref.shape)
    err = float(jnp.max(jnp.abs(out.astype(jnp.float32) - ref)))
    assert err < 5e-2, f"3x3x3 mismatch vs reference: {err}"

    # --- Case 2: 1x1x1 conv + bias (fused fast path, no im2col) ------------
    N, Cin, D, H, W = 2, 32, 4, 8, 8
    Cout = 16
    x = jax.random.normal(k3, (N, Cin, D, H, W), dtype=jnp.float32)
    unit = Unit3DPallas(in_channels=Cin, output_channels=Cout,
                        kernel_shape=(1, 1, 1), stride=(1, 1, 1),
                        padding=0, use_batch_norm=True, use_bias=True,
                        key=k4)
    out = jax.block_until_ready(unit(x))
    ref = jax.block_until_ready(_reference(unit, x))
    assert out.shape == ref.shape == (N, Cout, D, H, W), (out.shape, ref.shape)
    err = float(jnp.max(jnp.abs(out.astype(jnp.float32) - ref)))
    assert err < 5e-2, f"1x1x1 mismatch vs reference: {err}"

    print("KERNEL_OK")
</pallas_src>

<mosaic_0001>
module attributes {stable_mosaic.version = 11 : i64} {
  func.func @_single_k_kernel(%arg0: i32, %arg1: i32, %arg2: memref<512x108xbf16, #tpu.memory_space<vmem>>, %arg3: memref<108x128xbf16, #tpu.memory_space<vmem>>, %arg4: memref<1x128xf32, #tpu.memory_space<vmem>>, %arg5: memref<1x128xf32, #tpu.memory_space<vmem>>, %arg6: memref<512x128xbf16, #tpu.memory_space<vmem>>) attributes {dimension_semantics = [#tpu.dimension_semantics<parallel>, #tpu.dimension_semantics<parallel>], iteration_bounds = array<i64: 2, 1>, scalar_prefetch = 0 : i64, scratch_operands = 0 : i64, tpu.core_type = #tpu.core_type<tc>, window_params = [{transform_indices = @transform_0, window_bounds = array<i64: 512, 108>}, {transform_indices = @transform_1, window_bounds = array<i64: 108, 128>}, {transform_indices = @transform_2, window_bounds = array<i64: 1, 128>}, {transform_indices = @transform_3, window_bounds = array<i64: 1, 128>}, {transform_indices = @transform_4, window_bounds = array<i64: 512, 128>}]} {
    %c0 = arith.constant 0 : index
    %c0_0 = arith.constant 0 : index
    %0 = vector.load %arg2[%c0, %c0_0] : memref<512x108xbf16, #tpu.memory_space<vmem>>, vector<512x108xbf16>
    %c0_1 = arith.constant 0 : index
    %c0_2 = arith.constant 0 : index
    %1 = vector.load %arg3[%c0_1, %c0_2] : memref<108x128xbf16, #tpu.memory_space<vmem>>, vector<108x128xbf16>
    %cst = arith.constant dense<0.000000e+00> : vector<512x128xf32>
    %2 = tpu.matmul %0, %1, %cst {dimension_numbers = #tpu.dot_dimension_numbers<[1], [0], [0], [1], [0, 0, 1, 1], [], []>} : vector<512x108xbf16>, vector<108x128xbf16>, vector<512x128xf32> -> vector<512x128xf32>
    %c0_3 = arith.constant 0 : index
    %c0_4 = arith.constant 0 : index
    %3 = vector.load %arg4[%c0_3, %c0_4] : memref<1x128xf32, #tpu.memory_space<vmem>>, vector<1x128xf32>
    %4 = vector.broadcast %3 : vector<1x128xf32> to vector<512x128xf32>
    %5 = arith.mulf %2, %4 : vector<512x128xf32>
    %c0_5 = arith.constant 0 : index
    %c0_6 = arith.constant 0 : index
    %6 = vector.load %arg5[%c0_5, %c0_6] : memref<1x128xf32, #tpu.memory_space<vmem>>, vector<1x128xf32>
    %7 = vector.broadcast %6 : vector<1x128xf32> to vector<512x128xf32>
    %8 = arith.addf %5, %7 : vector<512x128xf32>
    %cst_7 = arith.constant 5.000000e-01 : f32
    %9 = vector.broadcast %cst_7 : f32 to vector<512x128xf32>
    %10 = arith.mulf %9, %8 : vector<512x128xf32>
    %cst_8 = arith.constant 0.707106769 : f32
    %11 = vector.broadcast %cst_8 : f32 to vector<512x128xf32>
    %12 = arith.mulf %8, %11 : vector<512x128xf32>
    %13 = math.absf %12 : vector<512x128xf32>
    %cst_9 = arith.constant 0.327591091 : f32
    %14 = vector.broadcast %cst_9 : f32 to vector<512x128xf32>
    %15 = arith.mulf %14, %13 : vector<512x128xf32>
    %cst_10 = arith.constant 1.000000e+00 : f32
    %16 = vector.broadcast %cst_10 : f32 to vector<512x128xf32>
    %17 = arith.addf %16, %15 : vector<512x128xf32>
    %cst_11 = arith.constant 1.000000e+00 : f32
    %18 = vector.broadcast %cst_11 : f32 to vector<512x128xf32>
    %19 = arith.divf %18, %17 : vector<512x128xf32>
    %cst_12 = arith.constant 1.06140542 : f32
    %20 = vector.broadcast %cst_12 : f32 to vector<512x128xf32>
    %21 = arith.mulf %20, %19 : vector<512x128xf32>
    %cst_13 = arith.constant -1.45315206 : f32
    %22 = vector.broadcast %cst_13 : f32 to vector<512x128xf32>
    %23 = arith.addf %21, %22 : vector<512x128xf32>
    %24 = arith.mulf %23, %19 : vector<512x128xf32>
    %cst_14 = arith.constant 1.42141378 : f32
    %25 = vector.broadcast %cst_14 : f32 to vector<512x128xf32>
    %26 = arith.addf %24, %25 : vector<512x128xf32>
    %27 = arith.mulf %26, %19 : vector<512x128xf32>
    %cst_15 = arith.constant -0.284496725 : f32
    %28 = vector.broadcast %cst_15 : f32 to vector<512x128xf32>
    %29 = arith.addf %27, %28 : vector<512x128xf32>
    %30 = arith.mulf %29, %19 : vector<512x128xf32>
    %cst_16 = arith.constant 0.254829586 : f32
    %31 = vector.broadcast %cst_16 : f32 to vector<512x128xf32>
    %32 = arith.addf %30, %31 : vector<512x128xf32>
    %33 = arith.mulf %32, %19 : vector<512x128xf32>
    %cst_17 = arith.constant 0.000000e+00 : f32
    %34 = vector.broadcast %cst_17 : f32 to vector<512x128xf32>
    %35 = arith.subf %34, %13 : vector<512x128xf32>
    %36 = arith.mulf %35, %13 : vector<512x128xf32>
    %37 = math.exp %36 : vector<512x128xf32>
    %38 = arith.mulf %33, %37 : vector<512x128xf32>
    %cst_18 = arith.constant 1.000000e+00 : f32
    %39 = vector.broadcast %cst_18 : f32 to vector<512x128xf32>
    %40 = arith.subf %39, %38 : vector<512x128xf32>
    %cst_19 = arith.constant 0.000000e+00 : f32
    %41 = vector.broadcast %cst_19 : f32 to vector<512x128xf32>
    %42 = arith.cmpf oge, %12, %41 : vector<512x128xf32>
    %cst_20 = arith.constant 0.000000e+00 : f32
    %43 = vector.broadcast %cst_20 : f32 to vector<512x128xf32>
    %44 = arith.subf %43, %40 : vector<512x128xf32>
    %45 = arith.select %42, %40, %44 : vector<512x128xi1>, vector<512x128xf32>
    %cst_21 = arith.constant 1.000000e+00 : f32
    %46 = vector.broadcast %cst_21 : f32 to vector<512x128xf32>
    %47 = arith.addf %46, %45 : vector<512x128xf32>
    %48 = arith.mulf %10, %47 : vector<512x128xf32>
    %49 = arith.truncf %48 : vector<512x128xf32> to vector<512x128xbf16>
    %c0_22 = arith.constant 0 : index
    %c0_23 = arith.constant 0 : index
    %50 = vector.load %arg6[%c0_22, %c0_23] : memref<512x128xbf16, #tpu.memory_space<vmem>>, vector<512x128xbf16>
    tpu.vector_store %arg6[%c0_22, %c0_23], %49 {strides = array<i32>} : memref<512x128xbf16, #tpu.memory_space<vmem>>, vector<512x128xbf16>,
    return
  }
  func.func @transform_0(%arg0: i32, %arg1: i32) -> (i32, i32) {
    %c0_i32 = arith.constant 0 : i32
    %c0_i32_0 = arith.constant 0 : i32
    return %arg0, %c0_i32 : i32, i32
  }
  func.func @transform_1(%arg0: i32, %arg1: i32) -> (i32, i32) {
    %c0_i32 = arith.constant 0 : i32
    %c0_i32_0 = arith.constant 0 : i32
    return %c0_i32, %arg1 : i32, i32
  }
  func.func @transform_2(%arg0: i32, %arg1: i32) -> (i32, i32) {
    %c0_i32 = arith.constant 0 : i32
    %c0_i32_0 = arith.constant 0 : i32
    return %c0_i32, %arg1 : i32, i32
  }
  func.func @transform_3(%arg0: i32, %arg1: i32) -> (i32, i32) {
    %c0_i32 = arith.constant 0 : i32
    %c0_i32_0 = arith.constant 0 : i32
    return %c0_i32, %arg1 : i32, i32
  }
  func.func @transform_4(%arg0: i32, %arg1: i32) -> (i32, i32) {
    %c0_i32 = arith.constant 0 : i32
    return %arg0, %arg1 : i32, i32
  }
}

</mosaic_0001>

<llo_original>
// kernel: tpu_custom_call.1
$region0: #{tpu_custom_call.1}
  #allocation0 [shape = 'u32[]', space=smem, size = 0x4, offset = 0x4, fixed_abs, tag = 'smem constant byte address 0x4 - core index']
  #allocation1 [shape = 'u32[144,128]{1,0:T(1,128)}', space=vmem, size = 0x12000, scoped, tag = 'internal scratch']
  %s0 = inlined_call_operand.vmem [shape: bf16[1024,108], index: 0, kind: input, shape index: {}]
  %s1 = inlined_call_operand.vmem [shape: bf16[108,128], index: 1, kind: input, shape index: {}]
  %s2 = inlined_call_operand.vmem [shape: f32[1,128], index: 2, kind: input, shape index: {}]
  %s3 = inlined_call_operand.vmem [shape: f32[1,128], index: 3, kind: input, shape index: {}]
  %s4 = inlined_call_operand.hbm [shape: bf16[1024,128], index: 4, kind: output, shape index: {}]
  %s5 = sld [smem:[#allocation0]]
  $region49: #{tpu_custom_call.1} parent=0
    _
  %s7 = ssub.s32 1, %s5
  %s8 = scalar_select 0, %s7, %s5
  $region1: #{tpu_custom_call.1} parent=0
    #allocation2 [shape = 'u8[262144]{0}', space=vmem, size = 0x40000, scoped, tag = 'output window, operand 0']
    #allocation3 [shape = 's32[2]{0}', space=sflag, size = 0x8, scoped, tag = 'scoped memory for tpu_custom_call.1']
    %9 = vsyncpa [#allocation3], 0
    %s10 = scalar_lea.sflag [#allocation3], 1
    %11 = vsyncpa %s10, 0
    loop: start=0, step=1, limit=4
    $region2: #{tpu_custom_call.1} parent=1 // loop_pre_header
      _
    $region3: #{tpu_custom_call.1} parent=1 // loop_header
      %s13 = sphi 0, %s17
      %p14 = scmp.ge.s32.totalorder %s13, 4
      %s20 = sphi 0, %s32
      %s21 = sphi 0, %s28
      %s22 = sphi 0, %s20
      %s23 = sphi 0, %s21
      %s24 = sphi 0, %s22
      %s25 = sphi 0, %s23
      %s35 = sphi 0, %s37
      %s38 = sphi 0, %s35
      %s39 = sphi 0, %s38
      %s55 = sphi 0, %s39
      %s61 = sphi 0, %s63
      %s64 = sphi 0, %s61
      %s65 = sphi 0, %s64
      %s81 = sphi 0, %s65
      %s87 = sphi 0, %s89
      %s90 = sphi 0, %s87
      %s91 = sphi 0, %s90
      %s107 = sphi 0, %s91
      %s113 = sphi 0, %s115
      %s116 = sphi 0, %s113
      %s117 = sphi 0, %s116
      %s133 = sphi 0, %s117
      %s141 = sphi 0, %s143
      %s144 = sphi 0, %s141
      %s145 = sphi 0, %s144
      %s161 = sphi 0, %s145
    $region4: #{tpu_custom_call.1} parent=1 // loop_header_branch
      %16 = sbr.rel (%p14) target = $region8
    $region5: #{tpu_custom_call.1} parent=1 // loop_body
      %s18 = ssub.s32 %s13, 1
      %s19 = ssub.s32 %s13, 2
      %s26 = sadd.s32 1, %s21
      %p27 = scmp.ge.s32.totalorder %s26, 1
      %s28 = scalar_select %p27, 0, %s26
      %s29 = sadd.s32 1, %s20
      %s30 = scalar_select %p27, %s29, %s20
      %p31 = scmp.ge.s32.totalorder %s30, 2
      %s32 = scalar_select %p31, 0, %s30
      %s33 = ssub.s32 %s20, %s32
      %p34 = scmp.eq.s32.totalorder %s33, 0
      %s36 = sadd.s32 %s35, 1
      %s37 = scalar_select %p34, %s35, %s36
      %p40 = pneg %p34
      %p41 = scmp.eq.s32.totalorder %s13, 1
      %p42 = por %p40, %p41
      %p43 = scmp.ne.s32.totalorder %s35, %s38
      %p44 = scmp.eq.s32.totalorder %s13, 0
      %p45 = por %p43, %p44
      %p46 = scmp.ne.s32.totalorder %s35, %s38
      %p47 = scmp.eq.s32.totalorder %s18, 1
      %p48 = por %p46, %p47
      %p49 = scmp.ne.s32.totalorder %s38, %s39
      %p50 = scmp.eq.s32.totalorder %s18, 0
      %p51 = por %p49, %p50
      %p52 = scmp.ne.s32.totalorder %s38, %s39
      %p53 = scmp.eq.s32.totalorder %s19, 1
      %p54 = por %p52, %p53
      %p56 = scmp.ne.s32.totalorder %s39, %s55
      %p57 = scmp.eq.s32.totalorder %s19, 0
      %p58 = por %p56, %p57
      %s59 = ssub.s32 %s21, %s28
      %p60 = scmp.eq.s32.totalorder %s59, 0
      %s62 = sadd.s32 %s61, 1
      %s63 = scalar_select %p60, %s61, %s62
      %p66 = pneg %p60
      %p67 = scmp.eq.s32.totalorder %s13, 1
      %p68 = por %p66, %p67
      %p69 = scmp.ne.s32.totalorder %s61, %s64
      %p70 = scmp.eq.s32.totalorder %s13, 0
      %p71 = por %p69, %p70
      %p72 = scmp.ne.s32.totalorder %s61, %s64
      %p73 = scmp.eq.s32.totalorder %s18, 1
      %p74 = por %p72, %p73
      %p75 = scmp.ne.s32.totalorder %s64, %s65
      %p76 = scmp.eq.s32.totalorder %s18, 0
      %p77 = por %p75, %p76
      %p78 = scmp.ne.s32.totalorder %s64, %s65
      %p79 = scmp.eq.s32.totalorder %s19, 1
      %p80 = por %p78, %p79
      %p82 = scmp.ne.s32.totalorder %s65, %s81
      %p83 = scmp.eq.s32.totalorder %s19, 0
      %p84 = por %p82, %p83
      %s85 = ssub.s32 %s21, %s28
      %p86 = scmp.eq.s32.totalorder %s85, 0
      %s88 = sadd.s32 %s87, 1
      %s89 = scalar_select %p86, %s87, %s88
      %p92 = pneg %p86
      %p93 = scmp.eq.s32.totalorder %s13, 1
      %p94 = por %p92, %p93
      %p95 = scmp.ne.s32.totalorder %s87, %s90
      %p96 = scmp.eq.s32.totalorder %s13, 0
      %p97 = por %p95, %p96
      %p98 = scmp.ne.s32.totalorder %s87, %s90
      %p99 = scmp.eq.s32.totalorder %s18, 1
      %p100 = por %p98, %p99
      %p101 = scmp.ne.s32.totalorder %s90, %s91
      %p102 = scmp.eq.s32.totalorder %s18, 0
      %p103 = por %p101, %p102
      %p104 = scmp.ne.s32.totalorder %s90, %s91
      %p105 = scmp.eq.s32.totalorder %s19, 1
      %p106 = por %p104, %p105
      %p108 = scmp.ne.s32.totalorder %s91, %s107
      %p109 = scmp.eq.s32.totalorder %s19, 0
      %p110 = por %p108, %p109
      %s111 = ssub.s32 %s21, %s28
      %p112 = scmp.eq.s32.totalorder %s111, 0
      %s114 = sadd.s32 %s113, 1
      %s115 = scalar_select %p112, %s113, %s114
      %p118 = pneg %p112
      %p119 = scmp.eq.s32.totalorder %s13, 1
      %p120 = por %p118, %p119
      %p121 = scmp.ne.s32.totalorder %s113, %s116
      %p122 = scmp.eq.s32.totalorder %s13, 0
      %p123 = por %p121, %p122
      %p124 = scmp.ne.s32.totalorder %s113, %s116
      %p125 = scmp.eq.s32.totalorder %s18, 1
      %p126 = por %p124, %p125
      %p127 = scmp.ne.s32.totalorder %s116, %s117
      %p128 = scmp.eq.s32.totalorder %s18, 0
      %p129 = por %p127, %p128
      %p130 = scmp.ne.s32.totalorder %s116, %s117
      %p131 = scmp.eq.s32.totalorder %s19, 1
      %p132 = por %p130, %p131
      %p134 = scmp.ne.s32.totalorder %s117, %s133
      %p135 = scmp.eq.s32.totalorder %s19, 0
      %p136 = por %p134, %p135
      %s137 = ssub.s32 %s20, %s32
      %s138 = ssub.s32 %s21, %s28
      %s139 = sor.u32 %s137, %s138
      %p140 = scmp.eq.s32.totalorder %s139, 0
      %s142 = sadd.s32 %s141, 1
      %s143 = scalar_select %p140, %s141, %s142
      %p146 = pneg %p140
      %p147 = scmp.eq.s32.totalorder %s13, 1
      %p148 = por %p146, %p147
      %p149 = scmp.ne.s32.totalorder %s141, %s144
      %p150 = scmp.eq.s32.totalorder %s13, 0
      %p151 = por %p149, %p150
      %p152 = scmp.ne.s32.totalorder %s141, %s144
      %p153 = scmp.eq.s32.totalorder %s18, 1
      %p154 = por %p152, %p153
      %p155 = scmp.ne.s32.totalorder %s144, %s145
      %p156 = scmp.eq.s32.totalorder %s18, 0
      %p157 = por %p155, %p156
      %p158 = scmp.ne.s32.totalorder %s144, %s145
      %p159 = scmp.eq.s32.totalorder %s19, 1
      %p160 = por %p158, %p159
      %p162 = scmp.ne.s32.totalorder %s145, %s161
      %p163 = scmp.eq.s32.totalorder %s19, 0
      %p164 = por %p162, %p163
      %p165 = scmp.le.s32.totalorder 1, %s13
      %p166 = scmp.lt.s32.totalorder %s13, 3
      %p167 = pnand %p165, %p166
      %p168 = pneg %p167
      // Predicated region
      $region9: #{tpu_custom_call.1} parent=5 // pred_check
        _
      $region10: #{tpu_custom_call.1} parent=5 // pred_check_branch
        %170 = sbr.rel (%p167) target = $region12
      $region11: #{tpu_custom_call.1} parent=5 // pred_region
        %s171 = ssub.s32 %s13, 1
        // Predicated region
        $region13: #{tpu_custom_call.1} parent=11 // pred_check
          %p172 = pneg %p77
        $region14: #{tpu_custom_call.1} parent=11 // pred_check_branch
          %174 = sbr.rel (%p172) target = $region16
        $region15: #{tpu_custom_call.1} parent=11 // pred_region
          %p175 = scmp.lt.s32.totalorder %s23, 0
          %s176 = scalar_select %p175, %s23, 0
          %s177 = smul.addr %s176, 4
          %s178 = scalar_lea.vmem %s1, %s177
        $region16: #{tpu_custom_call.1} parent=11 // pred_fallthru
          _
        // Predicated region
        $region17: #{tpu_custom_call.1} parent=11 // pred_check
          %p179 = pneg %p103
        $region18: #{tpu_custom_call.1} parent=11 // pred_check_branch
          %181 = sbr.rel (%p179) target = $region20
        $region19: #{tpu_custom_call.1} parent=11 // pred_region
          %p182 = scmp.lt.s32.totalorder %s23, 0
          %s183 = scalar_select %p182, %s23, 0
          %s184 = scalar_lea.vmem %s2, %s183
        $region20: #{tpu_custom_call.1} parent=11 // pred_fallthru
          _
        // Predicated region
        $region21: #{tpu_custom_call.1} parent=11 // pred_check
          %p185 = pneg %p129
        $region22: #{tpu_custom_call.1} parent=11 // pred_check_branch
          %187 = sbr.rel (%p185) target = $region24
        $region23: #{tpu_custom_call.1} parent=11 // pred_region
          %p188 = scmp.lt.s32.totalorder %s23, 0
          %s189 = scalar_select %p188, %s23, 0
          %s190 = scalar_lea.vmem %s3, %s189
        $region24: #{tpu_custom_call.1} parent=11 // pred_fallthru
          _
      $region12: #{tpu_custom_call.1} parent=5 // pred_fallthru
        _
      %p191 = scmp.lt.s32.totalorder %s13, 2
      // Predicated region
      $region25: #{tpu_custom_call.1} parent=5 // pred_check
        %p192 = pneg %p191
      $region26: #{tpu_custom_call.1} parent=5 // pred_check_branch
        %194 = sbr.rel (%p192) target = $region28
      $region27: #{tpu_custom_call.1} parent=5 // pred_region
        // Predicated region
        $region29: #{tpu_custom_call.1} parent=27 // pred_check
          %p195 = pneg %p45
        $region30: #{tpu_custom_call.1} parent=27 // pred_check_branch
          %197 = sbr.rel (%p195) target = $region32
        $region31: #{tpu_custom_call.1} parent=27 // pred_region
          %s198 = smul.u32 64, %s20
          %p199 = scmp.lt.s32.totalorder %s198, 127
          %s200 = scalar_select %p199, %s198, 127
          %s201 = smul.addr %s200, 4
          %s202 = scalar_lea.vmem %s0, %s201
          %s203 = smul.u32 64, %s20
        $region32: #{tpu_custom_call.1} parent=27 // pred_fallthru
          _
      $region28: #{tpu_custom_call.1} parent=5 // pred_fallthru
        _
      %p204 = scmp.le.s32.totalorder 1, %s13
      %p205 = scmp.lt.s32.totalorder %s13, 3
      %p206 = pnand %p204, %p205
      %p207 = pneg %p206
      // Predicated region
      $region33: #{tpu_custom_call.1} parent=5 // pred_check
        _
      $region34: #{tpu_custom_call.1} parent=5 // pred_check_branch
        %209 = sbr.rel (%p206) target = $region36
      $region35: #{tpu_custom_call.1} parent=5 // pred_region
        %s210 = ssub.s32 %s13, 1
        %s211 = smul.u32 64, %s22
        %p212 = scmp.lt.s32.totalorder %s211, 127
        %s213 = scalar_select %p212, %s211, 127
        %s214 = smul.addr %s213, 4
        %s215 = scalar_lea.vmem %s0, %s214
        %p216 = pneg %p51
        %p217 = pneg %p48
        %p218 = scmp.lt.s32.totalorder %s23, 0
        %s219 = scalar_select %p218, %s23, 0
        %s220 = smul.addr %s219, 4
        %s221 = scalar_lea.vmem %s1, %s220
        %p222 = pneg %p77
        %p223 = pneg %p74
        %p224 = scmp.lt.s32.totalorder %s23, 0
        %s225 = scalar_select %p224, %s23, 0
        %s226 = scalar_lea.vmem %s2, %s225
        %p227 = pneg %p103
        %p228 = pneg %p100
        %p229 = scmp.lt.s32.totalorder %s23, 0
        %s230 = scalar_select %p229, %s23, 0
        %s231 = scalar_lea.vmem %s3, %s230
        %p232 = pneg %p129
        %p233 = pneg %p126
        %p234 = pneg %p157
        %p235 = pneg %p154
        %s236 = sand.u32 %s144, 1
        %s237 = scalar_lea.sflag [#allocation3], %s236
        %s238 = sand.u32 %s144, 1
        %s239 = smul.addr %s238, 256
        %s240 = scalar_lea.vmem [#allocation2], %s239
        %s241 = smul.u32 64, %s22
        %p242 = scmp.lt.s32.totalorder %s241, 127
        %s243 = scalar_select %p242, %s241, 127
        %s244 = smul.addr %s243, 4
        %s245 = scalar_lea.vmem %s0, %s244
        %s246 = smul.u32 64, %s22
        %p247 = scmp.lt.s32.totalorder %s23, 0
        %s248 = scalar_select %p247, %s23, 0
        %s249 = smul.addr %s248, 4
        %s250 = scalar_lea.vmem %s1, %s249
        %p251 = scmp.lt.s32.totalorder %s23, 0
        %s252 = scalar_select %p251, %s23, 0
        %s253 = scalar_lea.vmem %s2, %s252
        %p254 = scmp.lt.s32.totalorder %s23, 0
        %s255 = scalar_select %p254, %s23, 0
        %s256 = scalar_lea.vmem %s3, %s255
        %s257 = smul.u32 64, %s22
        %v259 = vld [vmem:[%s245] sm:$0xf]
        %v260 = vld [vmem:[%s245 + $0x4] sm:$0xf]
        %v261 = vld [vmem:[%s245 + $0x8] sm:$0xf]
        %v262 = vld [vmem:[%s245 + $0xc] sm:$0xf]
        %v263 = vld [vmem:[%s245 + $0x10] sm:$0xf]
        %v264 = vld [vmem:[%s245 + $0x14] sm:$0xf]
        %v265 = vld [vmem:[%s245 + $0x18] sm:$0xf]
        %v266 = vld [vmem:[%s245 + $0x1c] sm:$0xf]
        %v267 = vld [vmem:[%s245 + $0x20] sm:$0xf]
        %v268 = vld [vmem:[%s245 + $0x24] sm:$0xf]
        %v269 = vld [vmem:[%s245 + $0x28] sm:$0xf]
        %v270 = vld [vmem:[%s245 + $0x2c] sm:$0xf]
        %v271 = vld [vmem:[%s245 + $0x30] sm:$0xf]
        %v272 = vld [vmem:[%s245 + $0x34] sm:$0xf]
        %v273 = vld [vmem:[%s245 + $0x38] sm:$0xf]
        %v274 = vld [vmem:[%s245 + $0x3c] sm:$0xf]
        %v275 = vld [vmem:[%s245 + $0x40] sm:$0xf]
        %v276 = vld [vmem:[%s245 + $0x44] sm:$0xf]
        %v277 = vld [vmem:[%s245 + $0x48] sm:$0xf]
        %v278 = vld [vmem:[%s245 + $0x4c] sm:$0xf]
        %v279 = vld [vmem:[%s245 + $0x50] sm:$0xf]
        %v280 = vld [vmem:[%s245 + $0x54] sm:$0xf]
        %v281 = vld [vmem:[%s245 + $0x58] sm:$0xf]
        %v282 = vld [vmem:[%s245 + $0x5c] sm:$0xf]
        %v283 = vld [vmem:[%s245 + $0x60] sm:$0xf]
        %v284 = vld [vmem:[%s245 + $0x64] sm:$0xf]
        %v285 = vld [vmem:[%s245 + $0x68] sm:$0xf]
        %v286 = vld [vmem:[%s245 + $0x6c] sm:$0xf]
        %v287 = vld [vmem:[%s245 + $0x70] sm:$0xf]
        %v288 = vld [vmem:[%s245 + $0x74] sm:$0xf]
        %v289 = vld [vmem:[%s245 + $0x78] sm:$0xf]
        %v290 = vld [vmem:[%s245 + $0x7c] sm:$0xf]
        %v291 = vld [vmem:[%s245 + $0x80] sm:$0xf]
        %v292 = vld [vmem:[%s245 + $0x84] sm:$0xf]
        %v293 = vld [vmem:[%s245 + $0x88] sm:$0xf]
        %v294 = vld [vmem:[%s245 + $0x8c] sm:$0xf]
        %v295 = vld [vmem:[%s245 + $0x90] sm:$0xf]
        %v296 = vld [vmem:[%s245 + $0x94] sm:$0xf]
        %v297 = vld [vmem:[%s245 + $0x98] sm:$0xf]
        %v298 = vld [vmem:[%s245 + $0x9c] sm:$0xf]
        %v299 = vld [vmem:[%s245 + $0xa0] sm:$0xf]
        %v300 = vld [vmem:[%s245 + $0xa4] sm:$0xf]
        %v301 = vld [vmem:[%s245 + $0xa8] sm:$0xf]
        %v302 = vld [vmem:[%s245 + $0xac] sm:$0xf]
        %v303 = vld [vmem:[%s245 + $0xb0] sm:$0xf]
        %v304 = vld [vmem:[%s245 + $0xb4] sm:$0xf]
        %v305 = vld [vmem:[%s245 + $0xb8] sm:$0xf]
        %v306 = vld [vmem:[%s245 + $0xbc] sm:$0xf]
        %v307 = vld [vmem:[%s245 + $0xc0] sm:$0xf]
        %v308 = vld [vmem:[%s245 + $0xc4] sm:$0xf]
        %v309 = vld [vmem:[%s245 + $0xc8] sm:$0xf]
        %v310 = vld [vmem:[%s245 + $0xcc] sm:$0xf]
        %v311 = vld [vmem:[%s245 + $0xd0] sm:$0xf]
        %v312 = vld [vmem:[%s245 + $0xd4] sm:$0xf]
        %v313 = vld [vmem:[%s245 + $0xd8] sm:$0xf]
        %v314 = vld [vmem:[%s245 + $0xdc] sm:$0xf]
        %v315 = vld [vmem:[%s245 + $0xe0] sm:$0xf]
        %v316 = vld [vmem:[%s245 + $0xe4] sm:$0xf]
        %v317 = vld [vmem:[%s245 + $0xe8] sm:$0xf]
        %v318 = vld [vmem:[%s245 + $0xec] sm:$0xf]
        %v319 = vld [vmem:[%s245 + $0xf0] sm:$0xf]
        %v320 = vld [vmem:[%s245 + $0xf4] sm:$0xf]
        %v321 = vld [vmem:[%s245 + $0xf8] sm:$0xf]
        %v322 = vld [vmem:[%s245 + $0xfc] sm:$0xf]
        %v323 = vld [vmem:[%s250] sm:$0xf]
        %v324 = vld [vmem:[%s250 + $0x4] sm:$0xf]
        %v325 = vld [vmem:[%s250 + $0x8] sm:$0xf]
        %v326 = vld [vmem:[%s250 + $0xc] sm:$0xf]
        %v327 = vld [vmem:[%s250 + $0x10] sm:$0xf]
        %v328 = vld [vmem:[%s250 + $0x14] sm:$0xf]
        %v329 = vld [vmem:[%s250 + $0x18] sm:$0xf]
        %v330 = vld [vmem:[%s250 + $0x1c] sm:$0xf]
        %v331 = vld [vmem:[%s250 + $0x20] sm:$0xf]
        %v332 = vld [vmem:[%s250 + $0x24] sm:$0xf]
        %v333 = vld [vmem:[%s250 + $0x28] sm:$0xf]
        %v334 = vld [vmem:[%s250 + $0x2c] sm:$0xf]
        %v335 = vld [vmem:[%s250 + $0x30] sm:$0xf]
        %v336 = vld [vmem:[%s250 + $0x34] sm:$0x3]
        %v401 = vunpack.c.l.b16 %v259
        %v402 = vunpack.c.l.b16 %v260
        %v403 = vunpack.c.l.b16 %v261
        %v404 = vunpack.c.l.b16 %v262
        %v405 = vunpack.c.l.b16 %v263
        %v406 = vunpack.c.l.b16 %v264
        %v407 = vunpack.c.l.b16 %v265
        %v408 = vunpack.c.l.b16 %v266
        %v409 = vunpack.c.l.b16 %v267
        %v410 = vunpack.c.l.b16 %v268
        %v411 = vunpack.c.l.b16 %v269
        %v412 = vunpack.c.l.b16 %v270
        %v413 = vunpack.c.l.b16 %v271
        %v414 = vunpack.c.l.b16 %v272
        %v415 = vunpack.c.l.b16 %v273
        %v416 = vunpack.c.l.b16 %v274
        %v417 = vunpack.c.l.b16 %v275
        %v418 = vunpack.c.l.b16 %v276
        %v419 = vunpack.c.l.b16 %v277
        %v420 = vunpack.c.l.b16 %v278
        %v421 = vunpack.c.l.b16 %v279
        %v422 = vunpack.c.l.b16 %v280
        %v423 = vunpack.c.l.b16 %v281
        %v424 = vunpack.c.l.b16 %v282
        %v425 = vunpack.c.l.b16 %v283
        %v426 = vunpack.c.l.b16 %v284
        %v427 = vunpack.c.l.b16 %v285
        %v428 = vunpack.c.l.b16 %v286
        %v429 = vunpack.c.l.b16 %v287
        %v430 = vunpack.c.l.b16 %v288
        %v431 = vunpack.c.l.b16 %v289
        %v432 = vunpack.c.l.b16 %v290
        %v433 = vunpack.c.l.b16 %v291
        %v434 = vunpack.c.l.b16 %v292
        %v435 = vunpack.c.l.b16 %v293
        %v436 = vunpack.c.l.b16 %v294
        %v437 = vunpack.c.l.b16 %v295
        %v438 = vunpack.c.l.b16 %v296
        %v439 = vunpack.c.l.b16 %v297
        %v440 = vunpack.c.l.b16 %v298
        %v441 = vunpack.c.l.b16 %v299
        %v442 = vunpack.c.l.b16 %v300
        %v443 = vunpack.c.l.b16 %v301
        %v444 = vunpack.c.l.b16 %v302
        %v445 = vunpack.c.l.b16 %v303
        %v446 = vunpack.c.l.b16 %v304
        %v447 = vunpack.c.l.b16 %v305
        %v448 = vunpack.c.l.b16 %v306
        %v449 = vunpack.c.l.b16 %v307
        %v450 = vunpack.c.l.b16 %v308
        %v451 = vunpack.c.l.b16 %v309
        %v452 = vunpack.c.l.b16 %v310
        %v453 = vunpack.c.l.b16 %v311
        %v454 = vunpack.c.l.b16 %v312
        %v455 = vunpack.c.l.b16 %v313
        %v456 = vunpack.c.l.b16 %v314
        %v457 = vunpack.c.l.b16 %v315
        %v458 = vunpack.c.l.b16 %v316
        %v459 = vunpack.c.l.b16 %v317
        %v460 = vunpack.c.l.b16 %v318
        %v461 = vunpack.c.l.b16 %v319
        %v462 = vunpack.c.l.b16 %v320
        %v463 = vunpack.c.l.b16 %v321
        %v464 = vunpack.c.l.b16 %v322
        %v465 = vpack.c.b16 %v402, %v401
        %v466 = vpack.c.b16 %v404, %v403
        %v467 = vpack.c.b16 %v406, %v405
        %v468 = vpack.c.b16 %v408, %v407
        %v469 = vpack.c.b16 %v410, %v409
        %v470 = vpack.c.b16 %v412, %v411
        %v471 = vpack.c.b16 %v414, %v413
        %v472 = vpack.c.b16 %v416, %v415
        %v473 = vpack.c.b16 %v418, %v417
        %v474 = vpack.c.b16 %v420, %v419
        %v475 = vpack.c.b16 %v422, %v421
        %v476 = vpack.c.b16 %v424, %v423
        %v477 = vpack.c.b16 %v426, %v425
        %v478 = vpack.c.b16 %v428, %v427
        %v479 = vpack.c.b16 %v430, %v429
        %v480 = vpack.c.b16 %v432, %v431
        %v481 = vpack.c.b16 %v434, %v433
        %v482 = vpack.c.b16 %v436, %v435
        %v483 = vpack.c.b16 %v438, %v437
        %v484 = vpack.c.b16 %v440, %v439
        %v485 = vpack.c.b16 %v442, %v441
        %v486 = vpack.c.b16 %v444, %v443
        %v487 = vpack.c.b16 %v446, %v445
        %v488 = vpack.c.b16 %v448, %v447
        %v489 = vpack.c.b16 %v450, %v449
        %v490 = vpack.c.b16 %v452, %v451
        %v491 = vpack.c.b16 %v454, %v453
        %v492 = vpack.c.b16 %v456, %v455
        %v493 = vpack.c.b16 %v458, %v457
        %v494 = vpack.c.b16 %v460, %v459
        %v495 = vpack.c.b16 %v462, %v461
        %v496 = vpack.c.b16 %v464, %v463
        %v511 = vunpack.c.l.b16 %v323
        %v512 = vunpack.c.l.b16 %v324
        %v513 = vunpack.c.l.b16 %v325
        %v514 = vunpack.c.l.b16 %v326
        %v515 = vunpack.c.l.b16 %v327
        %v516 = vunpack.c.l.b16 %v328
        %v517 = vunpack.c.l.b16 %v329
        %v518 = vunpack.c.l.b16 %v330
        %v519 = vunpack.c.l.b16 %v331
        %v520 = vunpack.c.l.b16 %v332
        %v521 = vunpack.c.l.b16 %v333
        %v522 = vunpack.c.l.b16 %v334
        %v523 = vunpack.c.l.b16 %v335
        %v524 = vunpack.c.l.b16 %v336
        %v525 = vpack.c.b16 %v512, %v511
        %v526 = vpack.c.b16 %v514, %v513
        %v527 = vpack.c.b16 %v516, %v515
        %v528 = vpack.c.b16 %v518, %v517
        %v529 = vpack.c.b16 %v520, %v519
        %v530 = vpack.c.b16 %v522, %v521
        %v531 = vpack.c.b16 %v524, %v523
        %vm538 = vcmask 883712
        %v540 = vsel %vm538, %v465, 0
        %v543 = vsel %vm538, %v466, 0
        %v546 = vsel %vm538, %v467, 0
        %v549 = vsel %vm538, %v468, 0
        %v552 = vsel %vm538, %v469, 0
        %v555 = vsel %vm538, %v470, 0
        %v558 = vsel %vm538, %v471, 0
        %v561 = vsel %vm538, %v472, 0
        %v564 = vsel %vm538, %v473, 0
        %v567 = vsel %vm538, %v474, 0
        %v570 = vsel %vm538, %v475, 0
        %v573 = vsel %vm538, %v476, 0
        %v576 = vsel %vm538, %v477, 0
        %v579 = vsel %vm538, %v478, 0
        %v582 = vsel %vm538, %v479, 0
        %v585 = vsel %vm538, %v480, 0
        %v588 = vsel %vm538, %v481, 0
        %v591 = vsel %vm538, %v482, 0
        %v594 = vsel %vm538, %v483, 0
        %v597 = vsel %vm538, %v484, 0
        %v600 = vsel %vm538, %v485, 0
        %v603 = vsel %vm538, %v486, 0
        %v606 = vsel %vm538, %v487, 0
        %v609 = vsel %vm538, %v488, 0
        %v612 = vsel %vm538, %v489, 0
        %v615 = vsel %vm538, %v490, 0
        %v618 = vsel %vm538, %v491, 0
        %v621 = vsel %vm538, %v492, 0
        %v624 = vsel %vm538, %v493, 0
        %v627 = vsel %vm538, %v494, 0
        %v630 = vsel %vm538, %v495, 0
        %v633 = vsel %vm538, %v496, 0
        %vm635 = vcmask 1045504
        %v637 = vsel %vm635, %v531, 0
        %639 = vmatprep.subr.bf16.mxu0 0
        %640 = vmatpush1.bf16.msra.mxu0 0
        %641 = vmatprep.subr.bf16.mxu0 0
        %642 = vmatpush1.bf16.msra.mxu0 %v637
        %643 = vmatprep.subr.bf16.mxu0 0
        %644 = vmatpush1.bf16.msra.mxu0 %v530
        %645 = vmatprep.subr.bf16.mxu0 0
        %646 = vmatpush1.bf16.msra.mxu0 %v529
        %647 = vmatprep.subr.bf16.mxu0 0
        %648 = vmatpush1.bf16.msra.mxu0 %v528
        %649 = vmatprep.subr.bf16.mxu0 0
        %650 = vmatpush1.bf16.msra.mxu0 %v527
        %651 = vmatprep.subr.bf16.mxu0 0
        %652 = vmatpush1.bf16.msra.mxu0 %v526
        %653 = vmatprep.subr.bf16.mxu0 0
        %654 = vmatpush1.bf16.msra.mxu0 %v525
        %655 = vmatprep.subr.bf16.mxu0 0
        %656 = vmatpush2.bf16.msra.mxu0 0
        %657 = vmatprep.subr.bf16.mxu0 0
        %658 = vmatpush2.bf16.msra.mxu0 0
        %659 = vmatprep.subr.bf16.mxu0 0
        %660 = vmatpush2.bf16.msra.mxu0 0
        %661 = vmatprep.subr.bf16.mxu0 0
        %662 = vmatpush2.bf16.msra.mxu0 0
        %663 = vmatprep.subr.bf16.mxu0 0
        %664 = vmatpush2.bf16.msra.mxu0 0
        %665 = vmatprep.subr.bf16.mxu0 0
        %666 = vmatpush2.bf16.msra.mxu0 0
        %667 = vmatprep.subr.bf16.mxu0 0
        %668 = vmatpush2.bf16.msra.mxu0 0
        %669 = vmatprep.subr.bf16.mxu0 0
        %670 = vmatpush2.bf16.msra.mxu0 0
        %671 = vmatprep.mubr.bf16.mxu0 0
        %672 = vmatmul.mubr.bf16.gmra.mxu0 %v540
        %v673 = vpop.f32.mrf.mxu0
        %v674 = vadd.f32 0.0, %v673
        %v675 = vpop.f32.mrf.mxu0
        %v676 = vpop.f32.mrf.mxu0
        %v677 = vadd.f32 0.0, %v676
        %v678 = vpop.f32.mrf.mxu0
        %679 = vmatprep.mubr.bf16.mxu0 0
        %680 = vmatmul.mubr.bf16.gmra.mxu0 %v543
        %v681 = vpop.f32.mrf.mxu0
        %v682 = vadd.f32 0.0, %v681
        %v683 = vpop.f32.mrf.mxu0
        %v684 = vpop.f32.mrf.mxu0
        %v685 = vadd.f32 0.0, %v684
        %v686 = vpop.f32.mrf.mxu0
        %687 = vmatprep.mubr.bf16.mxu0 0
        %688 = vmatmul.mubr.bf16.gmra.mxu0 %v546
        %v689 = vpop.f32.mrf.mxu0
        %v690 = vadd.f32 0.0, %v689
        %v691 = vpop.f32.mrf.mxu0
        %v692 = vpop.f32.mrf.mxu0
        %v693 = vadd.f32 0.0, %v692
        %v694 = vpop.f32.mrf.mxu0
        %695 = vmatprep.mubr.bf16.mxu0 0
        %696 = vmatmul.mubr.bf16.gmra.mxu0 %v549
        %v697 = vpop.f32.mrf.mxu0
        %v698 = vadd.f32 0.0, %v697
        %v699 = vpop.f32.mrf.mxu0
        %v700 = vpop.f32.mrf.mxu0
        %v701 = vadd.f32 0.0, %v700
        %v702 = vpop.f32.mrf.mxu0
        %703 = vmatprep.mubr.bf16.mxu0 0
        %704 = vmatmul.mubr.bf16.gmra.mxu0 %v552
        %v705 = vpop.f32.mrf.mxu0
        %v706 = vadd.f32 0.0, %v705
        %v707 = vpop.f32.mrf.mxu0
        %v708 = vpop.f32.mrf.mxu0
        %v709 = vadd.f32 0.0, %v708
        %v710 = vpop.f32.mrf.mxu0
        %711 = vmatprep.mubr.bf16.mxu0 0
        %712 = vmatmul.mubr.bf16.gmra.mxu0 %v555
        %v713 = vpop.f32.mrf.mxu0
        %v714 = vadd.f32 0.0, %v713
        %v715 = vpop.f32.mrf.mxu0
        %v716 = vpop.f32.mrf.mxu0
        %v717 = vadd.f32 0.0, %v716
        %v718 = vpop.f32.mrf.mxu0
        %719 = vmatprep.mubr.bf16.mxu0 0
        %720 = vmatmul.mubr.bf16.gmra.mxu0 %v558
        %v721 = vpop.f32.mrf.mxu0
        %v722 = vadd.f32 0.0, %v721
        %v723 = vpop.f32.mrf.mxu0
        %v724 = vpop.f32.mrf.mxu0
        %v725 = vadd.f32 0.0, %v724
        %v726 = vpop.f32.mrf.mxu0
        %727 = vmatprep.mubr.bf16.mxu0 0
        %728 = vmatmul.mubr.bf16.gmra.mxu0 %v561
        %v729 = vpop.f32.mrf.mxu0
        %v730 = vadd.f32 0.0, %v729
        %v731 = vpop.f32.mrf.mxu0
        %v732 = vpop.f32.mrf.mxu0
        %v733 = vadd.f32 0.0, %v732
        %v734 = vpop.f32.mrf.mxu0
        %735 = vmatprep.mubr.bf16.mxu0 0
        %736 = vmatmul.mubr.bf16.gmra.mxu0 %v564
        %v737 = vpop.f32.mrf.mxu0
        %v738 = vadd.f32 0.0, %v737
        %v739 = vpop.f32.mrf.mxu0
        %v740 = vpop.f32.mrf.mxu0
        %v741 = vadd.f32 0.0, %v740
        %v742 = vpop.f32.mrf.mxu0
        %743 = vmatprep.mubr.bf16.mxu0 0
        %744 = vmatmul.mubr.bf16.gmra.mxu0 %v567
        %v745 = vpop.f32.mrf.mxu0
        %v746 = vadd.f32 0.0, %v745
        %v747 = vpop.f32.mrf.mxu0
        %v748 = vpop.f32.mrf.mxu0
        %v749 = vadd.f32 0.0, %v748
        %v750 = vpop.f32.mrf.mxu0
        %751 = vmatprep.mubr.bf16.mxu0 0
        %752 = vmatmul.mubr.bf16.gmra.mxu0 %v570
        %v753 = vpop.f32.mrf.mxu0
        %v754 = vadd.f32 0.0, %v753
        %v755 = vpop.f32.mrf.mxu0
        %v756 = vpop.f32.mrf.mxu0
        %v757 = vadd.f32 0.0, %v756
        %v758 = vpop.f32.mrf.mxu0
        %759 = vmatprep.mubr.bf16.mxu0 0
        %760 = vmatmul.mubr.bf16.gmra.mxu0 %v573
        %v761 = vpop.f32.mrf.mxu0
        %v762 = vadd.f32 0.0, %v761
        %v763 = vpop.f32.mrf.mxu0
        %v764 = vpop.f32.mrf.mxu0
        %v765 = vadd.f32 0.0, %v764
        %v766 = vpop.f32.mrf.mxu0
        %767 = vmatprep.mubr.bf16.mxu0 0
        %768 = vmatmul.mubr.bf16.gmra.mxu0 %v576
        %v769 = vpop.f32.mrf.mxu0
        %v770 = vadd.f32 0.0, %v769
        %v771 = vpop.f32.mrf.mxu0
        %v772 = vpop.f32.mrf.mxu0
        %v773 = vadd.f32 0.0, %v772
        %v774 = vpop.f32.mrf.mxu0
        %775 = vmatprep.mubr.bf16.mxu0 0
        %776 = vmatmul.mubr.bf16.gmra.mxu0 %v579
        %v777 = vpop.f32.mrf.mxu0
        %v778 = vadd.f32 0.0, %v777
        %v779 = vpop.f32.mrf.mxu0
        %v780 = vpop.f32.mrf.mxu0
        %v781 = vadd.f32 0.0, %v780
        %v782 = vpop.f32.mrf.mxu0
        %783 = vmatprep.mubr.bf16.mxu0 0
        %784 = vmatmul.mubr.bf16.gmra.mxu0 %v582
        %v785 = vpop.f32.mrf.mxu0
        %v786 = vadd.f32 0.0, %v785
        %v787 = vpop.f32.mrf.mxu0
        %v788 = vpop.f32.mrf.mxu0
        %v789 = vadd.f32 0.0, %v788
        %v790 = vpop.f32.mrf.mxu0
        %791 = vmatprep.mubr.bf16.mxu0 0
        %792 = vmatmul.mubr.bf16.gmra.mxu0 %v585
        %v793 = vpop.f32.mrf.mxu0
        %v794 = vadd.f32 0.0, %v793
        %v795 = vpop.f32.mrf.mxu0
        %v796 = vpop.f32.mrf.mxu0
        %v797 = vadd.f32 0.0, %v796
        %v798 = vpop.f32.mrf.mxu0
        %799 = vmatprep.mubr.bf16.mxu0 0
        %800 = vmatmul.mubr.bf16.gmra.mxu0 %v588
        %v801 = vpop.f32.mrf.mxu0
        %v802 = vadd.f32 0.0, %v801
        %v803 = vpop.f32.mrf.mxu0
        %v804 = vpop.f32.mrf.mxu0
        %v805 = vadd.f32 0.0, %v804
        %v806 = vpop.f32.mrf.mxu0
        %807 = vmatprep.mubr.bf16.mxu0 0
        %808 = vmatmul.mubr.bf16.gmra.mxu0 %v591
        %v809 = vpop.f32.mrf.mxu0
        %v810 = vadd.f32 0.0, %v809
        %v811 = vpop.f32.mrf.mxu0
        %v812 = vpop.f32.mrf.mxu0
        %v813 = vadd.f32 0.0, %v812
        %v814 = vpop.f32.mrf.mxu0
        %815 = vmatprep.mubr.bf16.mxu0 0
        %816 = vmatmul.mubr.bf16.gmra.mxu0 %v594
        %v817 = vpop.f32.mrf.mxu0
        %v818 = vadd.f32 0.0, %v817
        %v819 = vpop.f32.mrf.mxu0
        %v820 = vpop.f32.mrf.mxu0
        %v821 = vadd.f32 0.0, %v820
        %v822 = vpop.f32.mrf.mxu0
        %823 = vmatprep.mubr.bf16.mxu0 0
        %824 = vmatmul.mubr.bf16.gmra.mxu0 %v597
        %v825 = vpop.f32.mrf.mxu0
        %v826 = vadd.f32 0.0, %v825
        %v827 = vpop.f32.mrf.mxu0
        %v828 = vpop.f32.mrf.mxu0
        %v829 = vadd.f32 0.0, %v828
        %v830 = vpop.f32.mrf.mxu0
        %831 = vmatprep.mubr.bf16.mxu0 0
        %832 = vmatmul.mubr.bf16.gmra.mxu0 %v600
        %v833 = vpop.f32.mrf.mxu0
        %v834 = vadd.f32 0.0, %v833
        %v835 = vpop.f32.mrf.mxu0
        %v836 = vpop.f32.mrf.mxu0
        %v837 = vadd.f32 0.0, %v836
        %v838 = vpop.f32.mrf.mxu0
        %839 = vmatprep.mubr.bf16.mxu0 0
        %840 = vmatmul.mubr.bf16.gmra.mxu0 %v603
        %v841 = vpop.f32.mrf.mxu0
        %v842 = vadd.f32 0.0, %v841
        %v843 = vpop.f32.mrf.mxu0
        %v844 = vpop.f32.mrf.mxu0
        %v845 = vadd.f32 0.0, %v844
        %v846 = vpop.f32.mrf.mxu0
        %847 = vmatprep.mubr.bf16.mxu0 0
        %848 = vmatmul.mubr.bf16.gmra.mxu0 %v606
        %v849 = vpop.f32.mrf.mxu0
        %v850 = vadd.f32 0.0, %v849
        %v851 = vpop.f32.mrf.mxu0
        %v852 = vpop.f32.mrf.mxu0
        %v853 = vadd.f32 0.0, %v852
        %v854 = vpop.f32.mrf.mxu0
        %855 = vmatprep.mubr.bf16.mxu0 0
        %856 = vmatmul.mubr.bf16.gmra.mxu0 %v609
        %v857 = vpop.f32.mrf.mxu0
        %v858 = vadd.f32 0.0, %v857
        %v859 = vpop.f32.mrf.mxu0
        %v860 = vpop.f32.mrf.mxu0
        %v861 = vadd.f32 0.0, %v860
        %v862 = vpop.f32.mrf.mxu0
        %863 = vmatprep.mubr.bf16.mxu0 0
        %864 = vmatmul.mubr.bf16.gmra.mxu0 %v612
        %v865 = vpop.f32.mrf.mxu0
        %v866 = vadd.f32 0.0, %v865
        %v867 = vpop.f32.mrf.mxu0
        %v868 = vpop.f32.mrf.mxu0
        %v869 = vadd.f32 0.0, %v868
        %v870 = vpop.f32.mrf.mxu0
        %871 = vmatprep.mubr.bf16.mxu0 0
        %872 = vmatmul.mubr.bf16.gmra.mxu0 %v615
        %v873 = vpop.f32.mrf.mxu0
        %v874 = vadd.f32 0.0, %v873
        %v875 = vpop.f32.mrf.mxu0
        %v876 = vpop.f32.mrf.mxu0
        %v877 = vadd.f32 0.0, %v876
        %v878 = vpop.f32.mrf.mxu0
        %879 = vmatprep.mubr.bf16.mxu0 0
        %880 = vmatmul.mubr.bf16.gmra.mxu0 %v618
        %v881 = vpop.f32.mrf.mxu0
        %v882 = vadd.f32 0.0, %v881
        %v883 = vpop.f32.mrf.mxu0
        %v884 = vpop.f32.mrf.mxu0
        %v885 = vadd.f32 0.0, %v884
        %v886 = vpop.f32.mrf.mxu0
        %887 = vmatprep.mubr.bf16.mxu0 0
        %888 = vmatmul.mubr.bf16.gmra.mxu0 %v621
        %v889 = vpop.f32.mrf.mxu0
        %v890 = vadd.f32 0.0, %v889
        %v891 = vpop.f32.mrf.mxu0
        %v892 = vpop.f32.mrf.mxu0
        %v893 = vadd.f32 0.0, %v892
        %v894 = vpop.f32.mrf.mxu0
        %895 = vmatprep.mubr.bf16.mxu0 0
        %896 = vmatmul.mubr.bf16.gmra.mxu0 %v624
        %v897 = vpop.f32.mrf.mxu0
        %v898 = vadd.f32 0.0, %v897
        %v899 = vpop.f32.mrf.mxu0
        %v900 = vpop.f32.mrf.mxu0
        %v901 = vadd.f32 0.0, %v900
        %v902 = vpop.f32.mrf.mxu0
        %903 = vmatprep.mubr.bf16.mxu0 0
        %904 = vmatmul.mubr.bf16.gmra.mxu0 %v627
        %v905 = vpop.f32.mrf.mxu0
        %v906 = vadd.f32 0.0, %v905
        %v907 = vpop.f32.mrf.mxu0
        %v908 = vpop.f32.mrf.mxu0
        %v909 = vadd.f32 0.0, %v908
        %v910 = vpop.f32.mrf.mxu0
        %911 = vmatprep.mubr.bf16.mxu0 0
        %912 = vmatmul.mubr.bf16.gmra.mxu0 %v630
        %v913 = vpop.f32.mrf.mxu0
        %v914 = vadd.f32 0.0, %v913
        %v915 = vpop.f32.mrf.mxu0
        %v916 = vpop.f32.mrf.mxu0
        %v917 = vadd.f32 0.0, %v916
        %v918 = vpop.f32.mrf.mxu0
        %919 = vmatprep.mubr.bf16.mxu0 0
        %920 = vmatmul.mubr.bf16.gmra.mxu0 %v633
        %v921 = vpop.f32.mrf.mxu0
        %v922 = vadd.f32 0.0, %v921
        %v923 = vpop.f32.mrf.mxu0
        %v924 = vpop.f32.mrf.mxu0
        %v925 = vadd.f32 0.0, %v924
        %v926 = vpop.f32.mrf.mxu0
        %927 = vdwg.mxu0
        %v928 = vld [vmem:[%s253] sm:$0x1]
        %v930 = vlaneseq
        %v931 = vshrl.u32 %v930, 7
        %v932 = vsub.s32 0, %v931
        %v933 = vrot.slane %v928, %v932
        %v935 = vmul.f32 %v674, %v933
        %v936 = vmul.f32 %v677, %v933
        %v937 = vmul.f32 %v682, %v933
        %v938 = vmul.f32 %v685, %v933
        %v939 = vmul.f32 %v690, %v933
        %v940 = vmul.f32 %v693, %v933
        %v941 = vmul.f32 %v698, %v933
        %v942 = vmul.f32 %v701, %v933
        %v943 = vmul.f32 %v706, %v933
        %v944 = vmul.f32 %v709, %v933
        %v945 = vmul.f32 %v714, %v933
        %v946 = vmul.f32 %v717, %v933
        %v947 = vmul.f32 %v722, %v933
        %v948 = vmul.f32 %v725, %v933
        %v949 = vmul.f32 %v730, %v933
        %v950 = vmul.f32 %v733, %v933
        %v951 = vmul.f32 %v738, %v933
        %v952 = vmul.f32 %v741, %v933
        %v953 = vmul.f32 %v746, %v933
        %v954 = vmul.f32 %v749, %v933
        %v955 = vmul.f32 %v754, %v933
        %v956 = vmul.f32 %v757, %v933
        %v957 = vmul.f32 %v762, %v933
        %v958 = vmul.f32 %v765, %v933
        %v959 = vmul.f32 %v770, %v933
        %v960 = vmul.f32 %v773, %v933
        %v961 = vmul.f32 %v778, %v933
        %v962 = vmul.f32 %v781, %v933
        %v963 = vmul.f32 %v786, %v933
        %v964 = vmul.f32 %v789, %v933
        %v965 = vmul.f32 %v794, %v933
        %v966 = vmul.f32 %v797, %v933
        %v967 = vmul.f32 %v802, %v933
        %v968 = vmul.f32 %v805, %v933
        %v969 = vmul.f32 %v810, %v933
        %v970 = vmul.f32 %v813, %v933
        %v971 = vmul.f32 %v818, %v933
        %v972 = vmul.f32 %v821, %v933
        %v973 = vmul.f32 %v826, %v933
        %v974 = vmul.f32 %v829, %v933
        %v975 = vmul.f32 %v834, %v933
        %v976 = vmul.f32 %v837, %v933
        %v977 = vmul.f32 %v842, %v933
        %v978 = vmul.f32 %v845, %v933
        %v979 = vmul.f32 %v850, %v933
        %v980 = vmul.f32 %v853, %v933
        %v981 = vmul.f32 %v858, %v933
        %v982 = vmul.f32 %v861, %v933
        %v983 = vmul.f32 %v866, %v933
        %v984 = vmul.f32 %v869, %v933
        %v985 = vmul.f32 %v874, %v933
        %v986 = vmul.f32 %v877, %v933
        %v987 = vmul.f32 %v882, %v933
        %v988 = vmul.f32 %v885, %v933
        %v989 = vmul.f32 %v890, %v933
        %v990 = vmul.f32 %v893, %v933
        %v991 = vmul.f32 %v898, %v933
        %v992 = vmul.f32 %v901, %v933
        %v993 = vmul.f32 %v906, %v933
        %v994 = vmul.f32 %v909, %v933
        %v995 = vmul.f32 %v914, %v933
        %v996 = vmul.f32 %v917, %v933
        %v997 = vmul.f32 %v922, %v933
        %v998 = vmul.f32 %v925, %v933
        %v999 = vld [vmem:[%s256] sm:$0x1]
        %v1001 = vlaneseq
        %v1002 = vshrl.u32 %v1001, 7
        %v1003 = vsub.s32 0, %v1002
        %v1004 = vrot.slane %v999, %v1003
        %v1006 = vadd.f32 %v935, %v1004
        %v1007 = vadd.f32 %v936, %v1004
        %v1008 = vadd.f32 %v937, %v1004
        %v1009 = vadd.f32 %v938, %v1004
        %v1010 = vadd.f32 %v939, %v1004
        %v1011 = vadd.f32 %v940, %v1004
        %v1012 = vadd.f32 %v941, %v1004
        %v1013 = vadd.f32 %v942, %v1004
        %v1014 = vadd.f32 %v943, %v1004
        %v1015 = vadd.f32 %v944, %v1004
        %v1016 = vadd.f32 %v945, %v1004
        %v1017 = vadd.f32 %v946, %v1004
        %v1018 = vadd.f32 %v947, %v1004
        %v1019 = vadd.f32 %v948, %v1004
        %v1020 = vadd.f32 %v949, %v1004
        %v1021 = vadd.f32 %v950, %v1004
        %v1022 = vadd.f32 %v951, %v1004
        %v1023 = vadd.f32 %v952, %v1004
        %v1024 = vadd.f32 %v953, %v1004
        %v1025 = vadd.f32 %v954, %v1004
        %v1026 = vadd.f32 %v955, %v1004
        %v1027 = vadd.f32 %v956, %v1004
        %v1028 = vadd.f32 %v957, %v1004
        %v1029 = vadd.f32 %v958, %v1004
        %v1030 = vadd.f32 %v959, %v1004
        %v1031 = vadd.f32 %v960, %v1004
        %v1032 = vadd.f32 %v961, %v1004
        %v1033 = vadd.f32 %v962, %v1004
        %v1034 = vadd.f32 %v963, %v1004
        %v1035 = vadd.f32 %v964, %v1004
        %v1036 = vadd.f32 %v965, %v1004
        %v1037 = vadd.f32 %v966, %v1004
        %v1038 = vadd.f32 %v967, %v1004
        %v1039 = vadd.f32 %v968, %v1004
        %v1040 = vadd.f32 %v969, %v1004
        %v1041 = vadd.f32 %v970, %v1004
        %v1042 = vadd.f32 %v971, %v1004
        %v1043 = vadd.f32 %v972, %v1004
        %v1044 = vadd.f32 %v973, %v1004
        %v1045 = vadd.f32 %v974, %v1004
        %v1046 = vadd.f32 %v975, %v1004
        %v1047 = vadd.f32 %v976, %v1004
        %v1048 = vadd.f32 %v977, %v1004
        %v1049 = vadd.f32 %v978, %v1004
        %v1050 = vadd.f32 %v979, %v1004
        %v1051 = vadd.f32 %v980, %v1004
        %v1052 = vadd.f32 %v981, %v1004
        %v1053 = vadd.f32 %v982, %v1004
        %v1054 = vadd.f32 %v983, %v1004
        %v1055 = vadd.f32 %v984, %v1004
        %v1056 = vadd.f32 %v985, %v1004
        %v1057 = vadd.f32 %v986, %v1004
        %v1058 = vadd.f32 %v987, %v1004
        %v1059 = vadd.f32 %v988, %v1004
        %v1060 = vadd.f32 %v989, %v1004
        %v1061 = vadd.f32 %v990, %v1004
        %v1062 = vadd.f32 %v991, %v1004
        %v1063 = vadd.f32 %v992, %v1004
        %v1064 = vadd.f32 %v993, %v1004
        %v1065 = vadd.f32 %v994, %v1004
        %v1066 = vadd.f32 %v995, %v1004
        %v1067 = vadd.f32 %v996, %v1004
        %v1068 = vadd.f32 %v997, %v1004
        %v1069 = vadd.f32 %v998, %v1004
        %v1070 = vmul.f32 %v1006, 0.5
        %v1071 = vmul.f32 %v1007, 0.5
        %v1072 = vmul.f32 %v1008, 0.5
        %v1073 = vmul.f32 %v1009, 0.5
        %v1074 = vmul.f32 %v1010, 0.5
        %v1075 = vmul.f32 %v1011, 0.5
        %v1076 = vmul.f32 %v1012, 0.5
        %v1077 = vmul.f32 %v1013, 0.5
        %v1078 = vmul.f32 %v1014, 0.5
        %v1079 = vmul.f32 %v1015, 0.5
        %v1080 = vmul.f32 %v1016, 0.5
        %v1081 = vmul.f32 %v1017, 0.5
        %v1082 = vmul.f32 %v1018, 0.5
        %v1083 = vmul.f32 %v1019, 0.5
        %v1084 = vmul.f32 %v1020, 0.5
        %v1085 = vmul.f32 %v1021, 0.5
        %v1086 = vmul.f32 %v1022, 0.5
        %v1087 = vmul.f32 %v1023, 0.5
        %v1088 = vmul.f32 %v1024, 0.5
        %v1089 = vmul.f32 %v1025, 0.5
        %v1090 = vmul.f32 %v1026, 0.5
        %v1091 = vmul.f32 %v1027, 0.5
        %v1092 = vmul.f32 %v1028, 0.5
        %v1093 = vmul.f32 %v1029, 0.5
        %v1094 = vmul.f32 %v1030, 0.5
        %v1095 = vmul.f32 %v1031, 0.5
        %v1096 = vmul.f32 %v1032, 0.5
        %v1097 = vmul.f32 %v1033, 0.5
        %v1098 = vmul.f32 %v1034, 0.5
        %v1099 = vmul.f32 %v1035, 0.5
        %v1100 = vmul.f32 %v1036, 0.5
        %v1101 = vmul.f32 %v1037, 0.5
        %v1102 = vmul.f32 %v1038, 0.5
        %v1103 = vmul.f32 %v1039, 0.5
        %v1104 = vmul.f32 %v1040, 0.5
        %v1105 = vmul.f32 %v1041, 0.5
        %v1106 = vmul.f32 %v1042, 0.5
        %v1107 = vmul.f32 %v1043, 0.5
        %v1108 = vmul.f32 %v1044, 0.5
        %v1109 = vmul.f32 %v1045, 0.5
        %v1110 = vmul.f32 %v1046, 0.5
        %v1111 = vmul.f32 %v1047, 0.5
        %v1112 = vmul.f32 %v1048, 0.5
        %v1113 = vmul.f32 %v1049, 0.5
        %v1114 = vmul.f32 %v1050, 0.5
        %v1115 = vmul.f32 %v1051, 0.5
        %v1116 = vmul.f32 %v1052, 0.5
        %v1117 = vmul.f32 %v1053, 0.5
        %v1118 = vmul.f32 %v1054, 0.5
        %v1119 = vmul.f32 %v1055, 0.5
        %v1120 = vmul.f32 %v1056, 0.5
        %v1121 = vmul.f32 %v1057, 0.5
        %v1122 = vmul.f32 %v1058, 0.5
        %v1123 = vmul.f32 %v1059, 0.5
        %v1124 = vmul.f32 %v1060, 0.5
        %v1125 = vmul.f32 %v1061, 0.5
        %v1126 = vmul.f32 %v1062, 0.5
        %v1127 = vmul.f32 %v1063, 0.5
        %v1128 = vmul.f32 %v1064, 0.5
        %v1129 = vmul.f32 %v1065, 0.5
        %v1130 = vmul.f32 %v1066, 0.5
        %v1131 = vmul.f32 %v1067, 0.5
        %v1132 = vmul.f32 %v1068, 0.5
        %v1133 = vmul.f32 %v1069, 0.5
        %v1134 = vmul.f32 %v1006, 0.70710677
        %v1135 = vmul.f32 %v1007, 0.70710677
        %v1136 = vmul.f32 %v1008, 0.70710677
        %v1137 = vmul.f32 %v1009, 0.70710677
        %v1138 = vmul.f32 %v1010, 0.70710677
        %v1139 = vmul.f32 %v1011, 0.70710677
        %v1140 = vmul.f32 %v1012, 0.70710677
        %v1141 = vmul.f32 %v1013, 0.70710677
        %v1142 = vmul.f32 %v1014, 0.70710677
        %v1143 = vmul.f32 %v1015, 0.70710677
        %v1144 = vmul.f32 %v1016, 0.70710677
        %v1145 = vmul.f32 %v1017, 0.70710677
        %v1146 = vmul.f32 %v1018, 0.70710677
        %v1147 = vmul.f32 %v1019, 0.70710677
        %v1148 = vmul.f32 %v1020, 0.70710677
        %v1149 = vmul.f32 %v1021, 0.70710677
        %v1150 = vmul.f32 %v1022, 0.70710677
        %v1151 = vmul.f32 %v1023, 0.70710677
        %v1152 = vmul.f32 %v1024, 0.70710677
        %v1153 = vmul.f32 %v1025, 0.70710677
        %v1154 = vmul.f32 %v1026, 0.70710677
        %v1155 = vmul.f32 %v1027, 0.70710677
        %v1156 = vmul.f32 %v1028, 0.70710677
        %v1157 = vmul.f32 %v1029, 0.70710677
        %v1158 = vmul.f32 %v1030, 0.70710677
        %v1159 = vmul.f32 %v1031, 0.70710677
        %v1160 = vmul.f32 %v1032, 0.70710677
        %v1161 = vmul.f32 %v1033, 0.70710677
        %v1162 = vmul.f32 %v1034, 0.70710677
        %v1163 = vmul.f32 %v1035, 0.70710677
        %v1164 = vmul.f32 %v1036, 0.70710677
        %v1165 = vmul.f32 %v1037, 0.70710677
        %v1166 = vmul.f32 %v1038, 0.70710677
        %v1167 = vmul.f32 %v1039, 0.70710677
        %v1168 = vmul.f32 %v1040, 0.70710677
        %v1169 = vmul.f32 %v1041, 0.70710677
        %v1170 = vmul.f32 %v1042, 0.70710677
        %v1171 = vmul.f32 %v1043, 0.70710677
        %v1172 = vmul.f32 %v1044, 0.70710677
        %v1173 = vmul.f32 %v1045, 0.70710677
        %v1174 = vmul.f32 %v1046, 0.70710677
        %v1175 = vmul.f32 %v1047, 0.70710677
        %v1176 = vmul.f32 %v1048, 0.70710677
        %v1177 = vmul.f32 %v1049, 0.70710677
        %v1178 = vmul.f32 %v1050, 0.70710677
        %v1179 = vmul.f32 %v1051, 0.70710677
        %v1180 = vmul.f32 %v1052, 0.70710677
        %v1181 = vmul.f32 %v1053, 0.70710677
        %v1182 = vmul.f32 %v1054, 0.70710677
        %v1183 = vmul.f32 %v1055, 0.70710677
        %v1184 = vmul.f32 %v1056, 0.70710677
        %v1185 = vmul.f32 %v1057, 0.70710677
        %v1186 = vmul.f32 %v1058, 0.70710677
        %v1187 = vmul.f32 %v1059, 0.70710677
        %v1188 = vmul.f32 %v1060, 0.70710677
        %v1189 = vmul.f32 %v1061, 0.70710677
        %v1190 = vmul.f32 %v1062, 0.70710677
        %v1191 = vmul.f32 %v1063, 0.70710677
        %v1192 = vmul.f32 %v1064, 0.70710677
        %v1193 = vmul.f32 %v1065, 0.70710677
        %v1194 = vmul.f32 %v1066, 0.70710677
        %v1195 = vmul.f32 %v1067, 0.70710677
        %v1196 = vmul.f32 %v1068, 0.70710677
        %v1197 = vmul.f32 %v1069, 0.70710677
        %v1198 = vand.u32 2147483647, %v1134
        %v1199 = vand.u32 2147483647, %v1135
        %v1200 = vand.u32 2147483647, %v1136
        %v1201 = vand.u32 2147483647, %v1137
        %v1202 = vand.u32 2147483647, %v1138
        %v1203 = vand.u32 2147483647, %v1139
        %v1204 = vand.u32 2147483647, %v1140
        %v1205 = vand.u32 2147483647, %v1141
        %v1206 = vand.u32 2147483647, %v1142
        %v1207 = vand.u32 2147483647, %v1143
        %v1208 = vand.u32 2147483647, %v1144
        %v1209 = vand.u32 2147483647, %v1145
        %v1210 = vand.u32 2147483647, %v1146
        %v1211 = vand.u32 2147483647, %v1147
        %v1212 = vand.u32 2147483647, %v1148
        %v1213 = vand.u32 2147483647, %v1149
        %v1214 = vand.u32 2147483647, %v1150
        %v1215 = vand.u32 2147483647, %v1151
        %v1216 = vand.u32 2147483647, %v1152
        %v1217 = vand.u32 2147483647, %v1153
        %v1218 = vand.u32 2147483647, %v1154
        %v1219 = vand.u32 2147483647, %v1155
        %v1220 = vand.u32 2147483647, %v1156
        %v1221 = vand.u32 2147483647, %v1157
        %v1222 = vand.u32 2147483647, %v1158
        %v1223 = vand.u32 2147483647, %v1159
        %v1224 = vand.u32 2147483647, %v1160
        %v1225 = vand.u32 2147483647, %v1161
        %v1226 = vand.u32 2147483647, %v1162
        %v1227 = vand.u32 2147483647, %v1163
        %v1228 = vand.u32 2147483647, %v1164
        %v1229 = vand.u32 2147483647, %v1165
        %v1230 = vand.u32 2147483647, %v1166
        %v1231 = vand.u32 2147483647, %v1167
        %v1232 = vand.u32 2147483647, %v1168
        %v1233 = vand.u32 2147483647, %v1169
        %v1234 = vand.u32 2147483647, %v1170
        %v1235 = vand.u32 2147483647, %v1171
        %v1236 = vand.u32 2147483647, %v1172
        %v1237 = vand.u32 2147483647, %v1173
        %v1238 = vand.u32 2147483647, %v1174
        %v1239 = vand.u32 2147483647, %v1175
        %v1240 = vand.u32 2147483647, %v1176
        %v1241 = vand.u32 2147483647, %v1177
        %v1242 = vand.u32 2147483647, %v1178
        %v1243 = vand.u32 2147483647, %v1179
        %v1244 = vand.u32 2147483647, %v1180
        %v1245 = vand.u32 2147483647, %v1181
        %v1246 = vand.u32 2147483647, %v1182
        %v1247 = vand.u32 2147483647, %v1183
        %v1248 = vand.u32 2147483647, %v1184
        %v1249 = vand.u32 2147483647, %v1185
        %v1250 = vand.u32 2147483647, %v1186
        %v1251 = vand.u32 2147483647, %v1187
        %v1252 = vand.u32 2147483647, %v1188
        %v1253 = vand.u32 2147483647, %v1189
        %v1254 = vand.u32 2147483647, %v1190
        %v1255 = vand.u32 2147483647, %v1191
        %v1256 = vand.u32 2147483647, %v1192
        %v1257 = vand.u32 2147483647, %v1193
        %v1258 = vand.u32 2147483647, %v1194
        %v1259 = vand.u32 2147483647, %v1195
        %v1260 = vand.u32 2147483647, %v1196
        %v1261 = vand.u32 2147483647, %v1197
        %v1262 = vmul.f32 %v1198, 0.3275911
        %v1263 = vmul.f32 %v1199, 0.3275911
        %v1264 = vmul.f32 %v1200, 0.3275911
        %v1265 = vmul.f32 %v1201, 0.3275911
        %v1266 = vmul.f32 %v1202, 0.3275911
        %v1267 = vmul.f32 %v1203, 0.3275911
        %v1268 = vmul.f32 %v1204, 0.3275911
        %v1269 = vmul.f32 %v1205, 0.3275911
        %v1270 = vmul.f32 %v1206, 0.3275911
        %v1271 = vmul.f32 %v1207, 0.3275911
        %v1272 = vmul.f32 %v1208, 0.3275911
        %v1273 = vmul.f32 %v1209, 0.3275911
        %v1274 = vmul.f32 %v1210, 0.3275911
        %v1275 = vmul.f32 %v1211, 0.3275911
        %v1276 = vmul.f32 %v1212, 0.3275911
        %v1277 = vmul.f32 %v1213, 0.3275911
        %v1278 = vmul.f32 %v1214, 0.3275911
        %v1279 = vmul.f32 %v1215, 0.3275911
        %v1280 = vmul.f32 %v1216, 0.3275911
        %v1281 = vmul.f32 %v1217, 0.3275911
        %v1282 = vmul.f32 %v1218, 0.3275911
        %v1283 = vmul.f32 %v1219, 0.3275911
        %v1284 = vmul.f32 %v1220, 0.3275911
        %v1285 = vmul.f32 %v1221, 0.3275911
        %v1286 = vmul.f32 %v1222, 0.3275911
        %v1287 = vmul.f32 %v1223, 0.3275911
        %v1288 = vmul.f32 %v1224, 0.3275911
        %v1289 = vmul.f32 %v1225, 0.3275911
        %v1290 = vmul.f32 %v1226, 0.3275911
        %v1291 = vmul.f32 %v1227, 0.3275911
        %v1292 = vmul.f32 %v1228, 0.3275911
        %v1293 = vmul.f32 %v1229, 0.3275911
        %v1294 = vmul.f32 %v1230, 0.3275911
        %v1295 = vmul.f32 %v1231, 0.3275911
        %v1296 = vmul.f32 %v1232, 0.3275911
        %v1297 = vmul.f32 %v1233, 0.3275911
        %v1298 = vmul.f32 %v1234, 0.3275911
        %v1299 = vmul.f32 %v1235, 0.3275911
        %v1300 = vmul.f32 %v1236, 0.3275911
        %v1301 = vmul.f32 %v1237, 0.3275911
        %v1302 = vmul.f32 %v1238, 0.3275911
        %v1303 = vmul.f32 %v1239, 0.3275911
        %v1304 = vmul.f32 %v1240, 0.3275911
        %v1305 = vmul.f32 %v1241, 0.3275911
        %v1306 = vmul.f32 %v1242, 0.3275911
        %v1307 = vmul.f32 %v1243, 0.3275911
        %v1308 = vmul.f32 %v1244, 0.3275911
        %v1309 = vmul.f32 %v1245, 0.3275911
        %v1310 = vmul.f32 %v1246, 0.3275911
        %v1311 = vmul.f32 %v1247, 0.3275911
        %v1312 = vmul.f32 %v1248, 0.3275911
        %v1313 = vmul.f32 %v1249, 0.3275911
        %v1314 = vmul.f32 %v1250, 0.3275911
        %v1315 = vmul.f32 %v1251, 0.3275911
        %v1316 = vmul.f32 %v1252, 0.3275911
        %v1317 = vmul.f32 %v1253, 0.3275911
        %v1318 = vmul.f32 %v1254, 0.3275911
        %v1319 = vmul.f32 %v1255, 0.3275911
        %v1320 = vmul.f32 %v1256, 0.3275911
        %v1321 = vmul.f32 %v1257, 0.3275911
        %v1322 = vmul.f32 %v1258, 0.3275911
        %v1323 = vmul.f32 %v1259, 0.3275911
        %v1324 = vmul.f32 %v1260, 0.3275911
        %v1325 = vmul.f32 %v1261, 0.3275911
        %v1326 = vadd.f32 %v1262, 1.0
        %v1327 = vadd.f32 %v1263, 1.0
        %v1328 = vadd.f32 %v1264, 1.0
        %v1329 = vadd.f32 %v1265, 1.0
        %v1330 = vadd.f32 %v1266, 1.0
        %v1331 = vadd.f32 %v1267, 1.0
        %v1332 = vadd.f32 %v1268, 1.0
        %v1333 = vadd.f32 %v1269, 1.0
        %v1334 = vadd.f32 %v1270, 1.0
        %v1335 = vadd.f32 %v1271, 1.0
        %v1336 = vadd.f32 %v1272, 1.0
        %v1337 = vadd.f32 %v1273, 1.0
        %v1338 = vadd.f32 %v1274, 1.0
        %v1339 = vadd.f32 %v1275, 1.0
        %v1340 = vadd.f32 %v1276, 1.0
        %v1341 = vadd.f32 %v1277, 1.0
        %v1342 = vadd.f32 %v1278, 1.0
        %v1343 = vadd.f32 %v1279, 1.0
        %v1344 = vadd.f32 %v1280, 1.0
        %v1345 = vadd.f32 %v1281, 1.0
        %v1346 = vadd.f32 %v1282, 1.0
        %v1347 = vadd.f32 %v1283, 1.0
        %v1348 = vadd.f32 %v1284, 1.0
        %v1349 = vadd.f32 %v1285, 1.0
        %v1350 = vadd.f32 %v1286, 1.0
        %v1351 = vadd.f32 %v1287, 1.0
        %v1352 = vadd.f32 %v1288, 1.0
        %v1353 = vadd.f32 %v1289, 1.0
        %v1354 = vadd.f32 %v1290, 1.0
        %v1355 = vadd.f32 %v1291, 1.0
        %v1356 = vadd.f32 %v1292, 1.0
        %v1357 = vadd.f32 %v1293, 1.0
        %v1358 = vadd.f32 %v1294, 1.0
        %v1359 = vadd.f32 %v1295, 1.0
        %v1360 = vadd.f32 %v1296, 1.0
        %v1361 = vadd.f32 %v1297, 1.0
        %v1362 = vadd.f32 %v1298, 1.0
        %v1363 = vadd.f32 %v1299, 1.0
        %v1364 = vadd.f32 %v1300, 1.0
        %v1365 = vadd.f32 %v1301, 1.0
        %v1366 = vadd.f32 %v1302, 1.0
        %v1367 = vadd.f32 %v1303, 1.0
        %v1368 = vadd.f32 %v1304, 1.0
        %v1369 = vadd.f32 %v1305, 1.0
        %v1370 = vadd.f32 %v1306, 1.0
        %v1371 = vadd.f32 %v1307, 1.0
        %v1372 = vadd.f32 %v1308, 1.0
        %v1373 = vadd.f32 %v1309, 1.0
        %v1374 = vadd.f32 %v1310, 1.0
        %v1375 = vadd.f32 %v1311, 1.0
        %v1376 = vadd.f32 %v1312, 1.0
        %v1377 = vadd.f32 %v1313, 1.0
        %v1378 = vadd.f32 %v1314, 1.0
        %v1379 = vadd.f32 %v1315, 1.0
        %v1380 = vadd.f32 %v1316, 1.0
        %v1381 = vadd.f32 %v1317, 1.0
        %v1382 = vadd.f32 %v1318, 1.0
        %v1383 = vadd.f32 %v1319, 1.0
        %v1384 = vadd.f32 %v1320, 1.0
        %v1385 = vadd.f32 %v1321, 1.0
        %v1386 = vadd.f32 %v1322, 1.0
        %v1387 = vadd.f32 %v1323, 1.0
        %v1388 = vadd.f32 %v1324, 1.0
        %v1389 = vadd.f32 %v1325, 1.0
        %v1390 = vrcp.pop %v1326
        %v1391 = vmul.f32 1.0, %v1390
        %v1392 = vrcp.pop %v1327
        %v1393 = vmul.f32 1.0, %v1392
        %v1394 = vrcp.pop %v1328
        %v1395 = vmul.f32 1.0, %v1394
        %v1396 = vrcp.pop %v1329
        %v1397 = vmul.f32 1.0, %v1396
        %v1398 = vrcp.pop %v1330
        %v1399 = vmul.f32 1.0, %v1398
        %v1400 = vrcp.pop %v1331
        %v1401 = vmul.f32 1.0, %v1400
        %v1402 = vrcp.pop %v1332
        %v1403 = vmul.f32 1.0, %v1402
        %v1404 = vrcp.pop %v1333
        %v1405 = vmul.f32 1.0, %v1404
        %v1406 = vrcp.pop %v1334
        %v1407 = vmul.f32 1.0, %v1406
        %v1408 = vrcp.pop %v1335
        %v1409 = vmul.f32 1.0, %v1408
        %v1410 = vrcp.pop %v1336
        %v1411 = vmul.f32 1.0, %v1410
        %v1412 = vrcp.pop %v1337
        %v1413 = vmul.f32 1.0, %v1412
        %v1414 = vrcp.pop %v1338
        %v1415 = vmul.f32 1.0, %v1414
        %v1416 = vrcp.pop %v1339
        %v1417 = vmul.f32 1.0, %v1416
        %v1418 = vrcp.pop %v1340
        %v1419 = vmul.f32 1.0, %v1418
        %v1420 = vrcp.pop %v1341
        %v1421 = vmul.f32 1.0, %v1420
        %v1422 = vrcp.pop %v1342
        %v1423 = vmul.f32 1.0, %v1422
        %v1424 = vrcp.pop %v1343
        %v1425 = vmul.f32 1.0, %v1424
        %v1426 = vrcp.pop %v1344
        %v1427 = vmul.f32 1.0, %v1426
        %v1428 = vrcp.pop %v1345
        %v1429 = vmul.f32 1.0, %v1428
        %v1430 = vrcp.pop %v1346
        %v1431 = vmul.f32 1.0, %v1430
        %v1432 = vrcp.pop %v1347
        %v1433 = vmul.f32 1.0, %v1432
        %v1434 = vrcp.pop %v1348
        %v1435 = vmul.f32 1.0, %v1434
        %v1436 = vrcp.pop %v1349
        %v1437 = vmul.f32 1.0, %v1436
        %v1438 = vrcp.pop %v1350
        %v1439 = vmul.f32 1.0, %v1438
        %v1440 = vrcp.pop %v1351
        %v1441 = vmul.f32 1.0, %v1440
        %v1442 = vrcp.pop %v1352
        %v1443 = vmul.f32 1.0, %v1442
        %v1444 = vrcp.pop %v1353
        %v1445 = vmul.f32 1.0, %v1444
        %v1446 = vrcp.pop %v1354
        %v1447 = vmul.f32 1.0, %v1446
        %v1448 = vrcp.pop %v1355
        %v1449 = vmul.f32 1.0, %v1448
        %v1450 = vrcp.pop %v1356
        %v1451 = vmul.f32 1.0, %v1450
        %v1452 = vrcp.pop %v1357
        %v1453 = vmul.f32 1.0, %v1452
        %v1454 = vrcp.pop %v1358
        %v1455 = vmul.f32 1.0, %v1454
        %v1456 = vrcp.pop %v1359
        %v1457 = vmul.f32 1.0, %v1456
        %v1458 = vrcp.pop %v1360
        %v1459 = vmul.f32 1.0, %v1458
        %v1460 = vrcp.pop %v1361
        %v1461 = vmul.f32 1.0, %v1460
        %v1462 = vrcp.pop %v1362
        %v1463 = vmul.f32 1.0, %v1462
        %v1464 = vrcp.pop %v1363
        %v1465 = vmul.f32 1.0, %v1464
        %v1466 = vrcp.pop %v1364
        %v1467 = vmul.f32 1.0, %v1466
        %v1468 = vrcp.pop %v1365
        %v1469 = vmul.f32 1.0, %v1468
        %v1470 = vrcp.pop %v1366
        %v1471 = vmul.f32 1.0, %v1470
        %v1472 = vrcp.pop %v1367
        %v1473 = vmul.f32 1.0, %v1472
        %v1474 = vrcp.pop %v1368
        %v1475 = vmul.f32 1.0, %v1474
        %v1476 = vrcp.pop %v1369
        %v1477 = vmul.f32 1.0, %v1476
        %v1478 = vrcp.pop %v1370
        %v1479 = vmul.f32 1.0, %v1478
        %v1480 = vrcp.pop %v1371
        %v1481 = vmul.f32 1.0, %v1480
        %v1482 = vrcp.pop %v1372
        %v1483 = vmul.f32 1.0, %v1482
        %v1484 = vrcp.pop %v1373
        %v1485 = vmul.f32 1.0, %v1484
        %v1486 = vrcp.pop %v1374
        %v1487 = vmul.f32 1.0, %v1486
        %v1488 = vrcp.pop %v1375
        %v1489 = vmul.f32 1.0, %v1488
        %v1490 = vrcp.pop %v1376
        %v1491 = vmul.f32 1.0, %v1490
        %v1492 = vrcp.pop %v1377
        %v1493 = vmul.f32 1.0, %v1492
        %v1494 = vrcp.pop %v1378
        %v1495 = vmul.f32 1.0, %v1494
        %v1496 = vrcp.pop %v1379
        %v1497 = vmul.f32 1.0, %v1496
        %v1498 = vrcp.pop %v1380
        %v1499 = vmul.f32 1.0, %v1498
        %v1500 = vrcp.pop %v1381
        %v1501 = vmul.f32 1.0, %v1500
        %v1502 = vrcp.pop %v1382
        %v1503 = vmul.f32 1.0, %v1502
        %v1504 = vrcp.pop %v1383
        %v1505 = vmul.f32 1.0, %v1504
        %v1506 = vrcp.pop %v1384
        %v1507 = vmul.f32 1.0, %v1506
        %v1508 = vrcp.pop %v1385
        %v1509 = vmul.f32 1.0, %v1508
        %v1510 = vrcp.pop %v1386
        %v1511 = vmul.f32 1.0, %v1510
        %v1512 = vrcp.pop %v1387
        %v1513 = vmul.f32 1.0, %v1512
        %v1514 = vrcp.pop %v1388
        %v1515 = vmul.f32 1.0, %v1514
        %v1516 = vrcp.pop %v1389
        %v1517 = vmul.f32 1.0, %v1516
        %v1518 = vmul.f32 %v1391, 1.0614054
        %v1519 = vmul.f32 %v1393, 1.0614054
        %v1520 = vmul.f32 %v1395, 1.0614054
        %v1521 = vmul.f32 %v1397, 1.0614054
        %v1522 = vmul.f32 %v1399, 1.0614054
        %v1523 = vmul.f32 %v1401, 1.0614054
        %v1524 = vmul.f32 %v1403, 1.0614054
        %v1525 = vmul.f32 %v1405, 1.0614054
        %v1526 = vmul.f32 %v1407, 1.0614054
        %v1527 = vmul.f32 %v1409, 1.0614054
        %v1528 = vmul.f32 %v1411, 1.0614054
        %v1529 = vmul.f32 %v1413, 1.0614054
        %v1530 = vmul.f32 %v1415, 1.0614054
        %v1531 = vmul.f32 %v1417, 1.0614054
        %v1532 = vmul.f32 %v1419, 1.0614054
        %v1533 = vmul.f32 %v1421, 1.0614054
        %v1534 = vmul.f32 %v1423, 1.0614054
        %v1535 = vmul.f32 %v1425, 1.0614054
        %v1536 = vmul.f32 %v1427, 1.0614054
        %v1537 = vmul.f32 %v1429, 1.0614054
        %v1538 = vmul.f32 %v1431, 1.0614054
        %v1539 = vmul.f32 %v1433, 1.0614054
        %v1540 = vmul.f32 %v1435, 1.0614054
        %v1541 = vmul.f32 %v1437, 1.0614054
        %v1542 = vmul.f32 %v1439, 1.0614054
        %v1543 = vmul.f32 %v1441, 1.0614054
        %v1544 = vmul.f32 %v1443, 1.0614054
        %v1545 = vmul.f32 %v1445, 1.0614054
        %v1546 = vmul.f32 %v1447, 1.0614054
        %v1547 = vmul.f32 %v1449, 1.0614054
        %v1548 = vmul.f32 %v1451, 1.0614054
        %v1549 = vmul.f32 %v1453, 1.0614054
        %v1550 = vmul.f32 %v1455, 1.0614054
        %v1551 = vmul.f32 %v1457, 1.0614054
        %v1552 = vmul.f32 %v1459, 1.0614054
        %v1553 = vmul.f32 %v1461, 1.0614054
        %v1554 = vmul.f32 %v1463, 1.0614054
        %v1555 = vmul.f32 %v1465, 1.0614054
        %v1556 = vmul.f32 %v1467, 1.0614054
        %v1557 = vmul.f32 %v1469, 1.0614054
        %v1558 = vmul.f32 %v1471, 1.0614054
        %v1559 = vmul.f32 %v1473, 1.0614054
        %v1560 = vmul.f32 %v1475, 1.0614054
        %v1561 = vmul.f32 %v1477, 1.0614054
        %v1562 = vmul.f32 %v1479, 1.0614054
        %v1563 = vmul.f32 %v1481, 1.0614054
        %v1564 = vmul.f32 %v1483, 1.0614054
        %v1565 = vmul.f32 %v1485, 1.0614054
        %v1566 = vmul.f32 %v1487, 1.0614054
        %v1567 = vmul.f32 %v1489, 1.0614054
        %v1568 = vmul.f32 %v1491, 1.0614054
        %v1569 = vmul.f32 %v1493, 1.0614054
        %v1570 = vmul.f32 %v1495, 1.0614054
        %v1571 = vmul.f32 %v1497, 1.0614054
        %v1572 = vmul.f32 %v1499, 1.0614054
        %v1573 = vmul.f32 %v1501, 1.0614054
        %v1574 = vmul.f32 %v1503, 1.0614054
        %v1575 = vmul.f32 %v1505, 1.0614054
        %v1576 = vmul.f32 %v1507, 1.0614054
        %v1577 = vmul.f32 %v1509, 1.0614054
        %v1578 = vmul.f32 %v1511, 1.0614054
        %v1579 = vmul.f32 %v1513, 1.0614054
        %v1580 = vmul.f32 %v1515, 1.0614054
        %v1581 = vmul.f32 %v1517, 1.0614054
        %v1582 = vadd.f32 %v1518, -1.4531521
        %v1583 = vadd.f32 %v1519, -1.4531521
        %v1584 = vadd.f32 %v1520, -1.4531521
        %v1585 = vadd.f32 %v1521, -1.4531521
        %v1586 = vadd.f32 %v1522, -1.4531521
        %v1587 = vadd.f32 %v1523, -1.4531521
        %v1588 = vadd.f32 %v1524, -1.4531521
        %v1589 = vadd.f32 %v1525, -1.4531521
        %v1590 = vadd.f32 %v1526, -1.4531521
        %v1591 = vadd.f32 %v1527, -1.4531521
        %v1592 = vadd.f32 %v1528, -1.4531521
        %v1593 = vadd.f32 %v1529, -1.4531521
        %v1594 = vadd.f32 %v1530, -1.4531521
        %v1595 = vadd.f32 %v1531, -1.4531521
        %v1596 = vadd.f32 %v1532, -1.4531521
        %v1597 = vadd.f32 %v1533, -1.4531521
        %v1598 = vadd.f32 %v1534, -1.4531521
        %v1599 = vadd.f32 %v1535, -1.4531521
        %v1600 = vadd.f32 %v1536, -1.4531521
        %v1601 = vadd.f32 %v1537, -1.4531521
        %v1602 = vadd.f32 %v1538, -1.4531521
        %v1603 = vadd.f32 %v1539, -1.4531521
        %v1604 = vadd.f32 %v1540, -1.4531521
        %v1605 = vadd.f32 %v1541, -1.4531521
        %v1606 = vadd.f32 %v1542, -1.4531521
        %v1607 = vadd.f32 %v1543, -1.4531521
        %v1608 = vadd.f32 %v1544, -1.4531521
        %v1609 = vadd.f32 %v1545, -1.4531521
        %v1610 = vadd.f32 %v1546, -1.4531521
        %v1611 = vadd.f32 %v1547, -1.4531521
        %v1612 = vadd.f32 %v1548, -1.4531521
        %v1613 = vadd.f32 %v1549, -1.4531521
        %v1614 = vadd.f32 %v1550, -1.4531521
        %v1615 = vadd.f32 %v1551, -1.4531521
        %v1616 = vadd.f32 %v1552, -1.4531521
        %v1617 = vadd.f32 %v1553, -1.4531521
        %v1618 = vadd.f32 %v1554, -1.4531521
        %v1619 = vadd.f32 %v1555, -1.4531521
        %v1620 = vadd.f32 %v1556, -1.4531521
        %v1621 = vadd.f32 %v1557, -1.4531521
        %v1622 = vadd.f32 %v1558, -1.4531521
        %v1623 = vadd.f32 %v1559, -1.4531521
        %v1624 = vadd.f32 %v1560, -1.4531521
        %v1625 = vadd.f32 %v1561, -1.4531521
        %v1626 = vadd.f32 %v1562, -1.4531521
        %v1627 = vadd.f32 %v1563, -1.4531521
        %v1628 = vadd.f32 %v1564, -1.4531521
        %v1629 = vadd.f32 %v1565, -1.4531521
        %v1630 = vadd.f32 %v1566, -1.4531521
        %v1631 = vadd.f32 %v1567, -1.4531521
        %v1632 = vadd.f32 %v1568, -1.4531521
        %v1633 = vadd.f32 %v1569, -1.4531521
        %v1634 = vadd.f32 %v1570, -1.4531521
        %v1635 = vadd.f32 %v1571, -1.4531521
        %v1636 = vadd.f32 %v1572, -1.4531521
        %v1637 = vadd.f32 %v1573, -1.4531521
        %v1638 = vadd.f32 %v1574, -1.4531521
        %v1639 = vadd.f32 %v1575, -1.4531521
        %v1640 = vadd.f32 %v1576, -1.4531521
        %v1641 = vadd.f32 %v1577, -1.4531521
        %v1642 = vadd.f32 %v1578, -1.4531521
        %v1643 = vadd.f32 %v1579, -1.4531521
        %v1644 = vadd.f32 %v1580, -1.4531521
        %v1645 = vadd.f32 %v1581, -1.4531521
        %v1646 = vmul.f32 %v1582, %v1391
        %v1647 = vmul.f32 %v1583, %v1393
        %v1648 = vmul.f32 %v1584, %v1395
        %v1649 = vmul.f32 %v1585, %v1397
        %v1650 = vmul.f32 %v1586, %v1399
        %v1651 = vmul.f32 %v1587, %v1401
        %v1652 = vmul.f32 %v1588, %v1403
        %v1653 = vmul.f32 %v1589, %v1405
        %v1654 = vmul.f32 %v1590, %v1407
        %v1655 = vmul.f32 %v1591, %v1409
        %v1656 = vmul.f32 %v1592, %v1411
        %v1657 = vmul.f32 %v1593, %v1413
        %v1658 = vmul.f32 %v1594, %v1415
        %v1659 = vmul.f32 %v1595, %v1417
        %v1660 = vmul.f32 %v1596, %v1419
        %v1661 = vmul.f32 %v1597, %v1421
        %v1662 = vmul.f32 %v1598, %v1423
        %v1663 = vmul.f32 %v1599, %v1425
        %v1664 = vmul.f32 %v1600, %v1427
        %v1665 = vmul.f32 %v1601, %v1429
        %v1666 = vmul.f32 %v1602, %v1431
        %v1667 = vmul.f32 %v1603, %v1433
        %v1668 = vmul.f32 %v1604, %v1435
        %v1669 = vmul.f32 %v1605, %v1437
        %v1670 = vmul.f32 %v1606, %v1439
        %v1671 = vmul.f32 %v1607, %v1441
        %v1672 = vmul.f32 %v1608, %v1443
        %v1673 = vmul.f32 %v1609, %v1445
        %v1674 = vmul.f32 %v1610, %v1447
        %v1675 = vmul.f32 %v1611, %v1449
        %v1676 = vmul.f32 %v1612, %v1451
        %v1677 = vmul.f32 %v1613, %v1453
        %v1678 = vmul.f32 %v1614, %v1455
        %v1679 = vmul.f32 %v1615, %v1457
        %v1680 = vmul.f32 %v1616, %v1459
        %v1681 = vmul.f32 %v1617, %v1461
        %v1682 = vmul.f32 %v1618, %v1463
        %v1683 = vmul.f32 %v1619, %v1465
        %v1684 = vmul.f32 %v1620, %v1467
        %v1685 = vmul.f32 %v1621, %v1469
        %v1686 = vmul.f32 %v1622, %v1471
        %v1687 = vmul.f32 %v1623, %v1473
        %v1688 = vmul.f32 %v1624, %v1475
        %v1689 = vmul.f32 %v1625, %v1477
        %v1690 = vmul.f32 %v1626, %v1479
        %v1691 = vmul.f32 %v1627, %v1481
        %v1692 = vmul.f32 %v1628, %v1483
        %v1693 = vmul.f32 %v1629, %v1485
        %v1694 = vmul.f32 %v1630, %v1487
        %v1695 = vmul.f32 %v1631, %v1489
        %v1696 = vmul.f32 %v1632, %v1491
        %v1697 = vmul.f32 %v1633, %v1493
        %v1698 = vmul.f32 %v1634, %v1495
        %v1699 = vmul.f32 %v1635, %v1497
        %v1700 = vmul.f32 %v1636, %v1499
        %v1701 = vmul.f32 %v1637, %v1501
        %v1702 = vmul.f32 %v1638, %v1503
        %v1703 = vmul.f32 %v1639, %v1505
        %v1704 = vmul.f32 %v1640, %v1507
        %v1705 = vmul.f32 %v1641, %v1509
        %v1706 = vmul.f32 %v1642, %v1511
        %v1707 = vmul.f32 %v1643, %v1513
        %v1708 = vmul.f32 %v1644, %v1515
        %v1709 = vmul.f32 %v1645, %v1517
        %v1710 = vadd.f32 %v1646, 1.4214138
        %v1711 = vadd.f32 %v1647, 1.4214138
        %v1712 = vadd.f32 %v1648, 1.4214138
        %v1713 = vadd.f32 %v1649, 1.4214138
        %v1714 = vadd.f32 %v1650, 1.4214138
        %v1715 = vadd.f32 %v1651, 1.4214138
        %v1716 = vadd.f32 %v1652, 1.4214138
        %v1717 = vadd.f32 %v1653, 1.4214138
        %v1718 = vadd.f32 %v1654, 1.4214138
        %v1719 = vadd.f32 %v1655, 1.4214138
        %v1720 = vadd.f32 %v1656, 1.4214138
        %v1721 = vadd.f32 %v1657, 1.4214138
        %v1722 = vadd.f32 %v1658, 1.4214138
        %v1723 = vadd.f32 %v1659, 1.4214138
        %v1724 = vadd.f32 %v1660, 1.4214138
        %v1725 = vadd.f32 %v1661, 1.4214138
        %v1726 = vadd.f32 %v1662, 1.4214138
        %v1727 = vadd.f32 %v1663, 1.4214138
        %v1728 = vadd.f32 %v1664, 1.4214138
        %v1729 = vadd.f32 %v1665, 1.4214138
        %v1730 = vadd.f32 %v1666, 1.4214138
        %v1731 = vadd.f32 %v1667, 1.4214138
        %v1732 = vadd.f32 %v1668, 1.4214138
        %v1733 = vadd.f32 %v1669, 1.4214138
        %v1734 = vadd.f32 %v1670, 1.4214138
        %v1735 = vadd.f32 %v1671, 1.4214138
        %v1736 = vadd.f32 %v1672, 1.4214138
        %v1737 = vadd.f32 %v1673, 1.4214138
        %v1738 = vadd.f32 %v1674, 1.4214138
        %v1739 = vadd.f32 %v1675, 1.4214138
        %v1740 = vadd.f32 %v1676, 1.4214138
        %v1741 = vadd.f32 %v1677, 1.4214138
        %v1742 = vadd.f32 %v1678, 1.4214138
        %v1743 = vadd.f32 %v1679, 1.4214138
        %v1744 = vadd.f32 %v1680, 1.4214138
        %v1745 = vadd.f32 %v1681, 1.4214138
        %v1746 = vadd.f32 %v1682, 1.4214138
        %v1747 = vadd.f32 %v1683, 1.4214138
        %v1748 = vadd.f32 %v1684, 1.4214138
        %v1749 = vadd.f32 %v1685, 1.4214138
        %v1750 = vadd.f32 %v1686, 1.4214138
        %v1751 = vadd.f32 %v1687, 1.4214138
        %v1752 = vadd.f32 %v1688, 1.4214138
        %v1753 = vadd.f32 %v1689, 1.4214138
        %v1754 = vadd.f32 %v1690, 1.4214138
        %v1755 = vadd.f32 %v1691, 1.4214138
        %v1756 = vadd.f32 %v1692, 1.4214138
        %v1757 = vadd.f32 %v1693, 1.4214138
        %v1758 = vadd.f32 %v1694, 1.4214138
        %v1759 = vadd.f32 %v1695, 1.4214138
        %v1760 = vadd.f32 %v1696, 1.4214138
        %v1761 = vadd.f32 %v1697, 1.4214138
        %v1762 = vadd.f32 %v1698, 1.4214138
        %v1763 = vadd.f32 %v1699, 1.4214138
        %v1764 = vadd.f32 %v1700, 1.4214138
        %v1765 = vadd.f32 %v1701, 1.4214138
        %v1766 = vadd.f32 %v1702, 1.4214138
        %v1767 = vadd.f32 %v1703, 1.4214138
        %v1768 = vadd.f32 %v1704, 1.4214138
        %v1769 = vadd.f32 %v1705, 1.4214138
        %v1770 = vadd.f32 %v1706, 1.4214138
        %v1771 = vadd.f32 %v1707, 1.4214138
        %v1772 = vadd.f32 %v1708, 1.4214138
        %v1773 = vadd.f32 %v1709, 1.4214138
        %v1774 = vmul.f32 %v1710, %v1391
        %v1775 = vmul.f32 %v1711, %v1393
        %v1776 = vmul.f32 %v1712, %v1395
        %v1777 = vmul.f32 %v1713, %v1397
        %v1778 = vmul.f32 %v1714, %v1399
        %v1779 = vmul.f32 %v1715, %v1401
        %v1780 = vmul.f32 %v1716, %v1403
        %v1781 = vmul.f32 %v1717, %v1405
        %v1782 = vmul.f32 %v1718, %v1407
        %v1783 = vmul.f32 %v1719, %v1409
        %v1784 = vmul.f32 %v1720, %v1411
        %v1785 = vmul.f32 %v1721, %v1413
        %v1786 = vmul.f32 %v1722, %v1415
        %v1787 = vmul.f32 %v1723, %v1417
        %v1788 = vmul.f32 %v1724, %v1419
        %v1789 = vmul.f32 %v1725, %v1421
        %v1790 = vmul.f32 %v1726, %v1423
        %v1791 = vmul.f32 %v1727, %v1425
        %v1792 = vmul.f32 %v1728, %v1427
        %v1793 = vmul.f32 %v1729, %v1429
        %v1794 = vmul.f32 %v1730, %v1431
        %v1795 = vmul.f32 %v1731, %v1433
        %v1796 = vmul.f32 %v1732, %v1435
        %v1797 = vmul.f32 %v1733, %v1437
        %v1798 = vmul.f32 %v1734, %v1439
        %v1799 = vmul.f32 %v1735, %v1441
        %v1800 = vmul.f32 %v1736, %v1443
        %v1801 = vmul.f32 %v1737, %v1445
        %v1802 = vmul.f32 %v1738, %v1447
        %v1803 = vmul.f32 %v1739, %v1449
        %v1804 = vmul.f32 %v1740, %v1451
        %v1805 = vmul.f32 %v1741, %v1453
        %v1806 = vmul.f32 %v1742, %v1455
        %v1807 = vmul.f32 %v1743, %v1457
        %v1808 = vmul.f32 %v1744, %v1459
        %v1809 = vmul.f32 %v1745, %v1461
        %v1810 = vmul.f32 %v1746, %v1463
        %v1811 = vmul.f32 %v1747, %v1465
        %v1812 = vmul.f32 %v1748, %v1467
        %v1813 = vmul.f32 %v1749, %v1469
        %v1814 = vmul.f32 %v1750, %v1471
        %v1815 = vmul.f32 %v1751, %v1473
        %v1816 = vmul.f32 %v1752, %v1475
        %v1817 = vmul.f32 %v1753, %v1477
        %v1818 = vmul.f32 %v1754, %v1479
        %v1819 = vmul.f32 %v1755, %v1481
        %v1820 = vmul.f32 %v1756, %v1483
        %v1821 = vmul.f32 %v1757, %v1485
        %v1822 = vmul.f32 %v1758, %v1487
        %v1823 = vmul.f32 %v1759, %v1489
        %v1824 = vmul.f32 %v1760, %v1491
        %v1825 = vmul.f32 %v1761, %v1493
        %v1826 = vmul.f32 %v1762, %v1495
        %v1827 = vmul.f32 %v1763, %v1497
        %v1828 = vmul.f32 %v1764, %v1499
        %v1829 = vmul.f32 %v1765, %v1501
        %v1830 = vmul.f32 %v1766, %v1503
        %v1831 = vmul.f32 %v1767, %v1505
        %v1832 = vmul.f32 %v1768, %v1507
        %v1833 = vmul.f32 %v1769, %v1509
        %v1834 = vmul.f32 %v1770, %v1511
        %v1835 = vmul.f32 %v1771, %v1513
        %v1836 = vmul.f32 %v1772, %v1515
        %v1837 = vmul.f32 %v1773, %v1517
        %v1838 = vadd.f32 %v1774, -0.28449672
        %v1839 = vadd.f32 %v1775, -0.28449672
        %v1840 = vadd.f32 %v1776, -0.28449672
        %v1841 = vadd.f32 %v1777, -0.28449672
        %v1842 = vadd.f32 %v1778, -0.28449672
        %v1843 = vadd.f32 %v1779, -0.28449672
        %v1844 = vadd.f32 %v1780, -0.28449672
        %v1845 = vadd.f32 %v1781, -0.28449672
        %v1846 = vadd.f32 %v1782, -0.28449672
        %v1847 = vadd.f32 %v1783, -0.28449672
        %v1848 = vadd.f32 %v1784, -0.28449672
        %v1849 = vadd.f32 %v1785, -0.28449672
        %v1850 = vadd.f32 %v1786, -0.28449672
        %v1851 = vadd.f32 %v1787, -0.28449672
        %v1852 = vadd.f32 %v1788, -0.28449672
        %v1853 = vadd.f32 %v1789, -0.28449672
        %v1854 = vadd.f32 %v1790, -0.28449672
        %v1855 = vadd.f32 %v1791, -0.28449672
        %v1856 = vadd.f32 %v1792, -0.28449672
        %v1857 = vadd.f32 %v1793, -0.28449672
        %v1858 = vadd.f32 %v1794, -0.28449672
        %v1859 = vadd.f32 %v1795, -0.28449672
        %v1860 = vadd.f32 %v1796, -0.28449672
        %v1861 = vadd.f32 %v1797, -0.28449672
        %v1862 = vadd.f32 %v1798, -0.28449672
        %v1863 = vadd.f32 %v1799, -0.28449672
        %v1864 = vadd.f32 %v1800, -0.28449672
        %v1865 = vadd.f32 %v1801, -0.28449672
        %v1866 = vadd.f32 %v1802, -0.28449672
        %v1867 = vadd.f32 %v1803, -0.28449672
        %v1868 = vadd.f32 %v1804, -0.28449672
        %v1869 = vadd.f32 %v1805, -0.28449672
        %v1870 = vadd.f32 %v1806, -0.28449672
        %v1871 = vadd.f32 %v1807, -0.28449672
        %v1872 = vadd.f32 %v1808, -0.28449672
        %v1873 = vadd.f32 %v1809, -0.28449672
        %v1874 = vadd.f32 %v1810, -0.28449672
        %v1875 = vadd.f32 %v1811, -0.28449672
        %v1876 = vadd.f32 %v1812, -0.28449672
        %v1877 = vadd.f32 %v1813, -0.28449672
        %v1878 = vadd.f32 %v1814, -0.28449672
        %v1879 = vadd.f32 %v1815, -0.28449672
        %v1880 = vadd.f32 %v1816, -0.28449672
        %v1881 = vadd.f32 %v1817, -0.28449672
        %v1882 = vadd.f32 %v1818, -0.28449672
        %v1883 = vadd.f32 %v1819, -0.28449672
        %v1884 = vadd.f32 %v1820, -0.28449672
        %v1885 = vadd.f32 %v1821, -0.28449672
        %v1886 = vadd.f32 %v1822, -0.28449672
        %v1887 = vadd.f32 %v1823, -0.28449672
        %v1888 = vadd.f32 %v1824, -0.28449672
        %v1889 = vadd.f32 %v1825, -0.28449672
        %v1890 = vadd.f32 %v1826, -0.28449672
        %v1891 = vadd.f32 %v1827, -0.28449672
        %v1892 = vadd.f32 %v1828, -0.28449672
        %v1893 = vadd.f32 %v1829, -0.28449672
        %v1894 = vadd.f32 %v1830, -0.28449672
        %v1895 = vadd.f32 %v1831, -0.28449672
        %v1896 = vadd.f32 %v1832, -0.28449672
        %v1897 = vadd.f32 %v1833, -0.28449672
        %v1898 = vadd.f32 %v1834, -0.28449672
        %v1899 = vadd.f32 %v1835, -0.28449672
        %v1900 = vadd.f32 %v1836, -0.28449672
        %v1901 = vadd.f32 %v1837, -0.28449672
        %v1902 = vmul.f32 %v1838, %v1391
        %v1903 = vmul.f32 %v1839, %v1393
        %v1904 = vmul.f32 %v1840, %v1395
        %v1905 = vmul.f32 %v1841, %v1397
        %v1906 = vmul.f32 %v1842, %v1399
        %v1907 = vmul.f32 %v1843, %v1401
        %v1908 = vmul.f32 %v1844, %v1403
        %v1909 = vmul.f32 %v1845, %v1405
        %v1910 = vmul.f32 %v1846, %v1407
        %v1911 = vmul.f32 %v1847, %v1409
        %v1912 = vmul.f32 %v1848, %v1411
        %v1913 = vmul.f32 %v1849, %v1413
        %v1914 = vmul.f32 %v1850, %v1415
        %v1915 = vmul.f32 %v1851, %v1417
        %v1916 = vmul.f32 %v1852, %v1419
        %v1917 = vmul.f32 %v1853, %v1421
        %v1918 = vmul.f32 %v1854, %v1423
        %v1919 = vmul.f32 %v1855, %v1425
        %v1920 = vmul.f32 %v1856, %v1427
        %v1921 = vmul.f32 %v1857, %v1429
        %v1922 = vmul.f32 %v1858, %v1431
        %v1923 = vmul.f32 %v1859, %v1433
        %v1924 = vmul.f32 %v1860, %v1435
        %v1925 = vmul.f32 %v1861, %v1437
        %v1926 = vmul.f32 %v1862, %v1439
        %v1927 = vmul.f32 %v1863, %v1441
        %v1928 = vmul.f32 %v1864, %v1443
        %v1929 = vmul.f32 %v1865, %v1445
        %v1930 = vmul.f32 %v1866, %v1447
        %v1931 = vmul.f32 %v1867, %v1449
        %v1932 = vmul.f32 %v1868, %v1451
        %v1933 = vmul.f32 %v1869, %v1453
        %v1934 = vmul.f32 %v1870, %v1455
        %v1935 = vmul.f32 %v1871, %v1457
        %v1936 = vmul.f32 %v1872, %v1459
        %v1937 = vmul.f32 %v1873, %v1461
        %v1938 = vmul.f32 %v1874, %v1463
        %v1939 = vmul.f32 %v1875, %v1465
        %v1940 = vmul.f32 %v1876, %v1467
        %v1941 = vmul.f32 %v1877, %v1469
        %v1942 = vmul.f32 %v1878, %v1471
        %v1943 = vmul.f32 %v1879, %v1473
        %v1944 = vmul.f32 %v1880, %v1475
        %v1945 = vmul.f32 %v1881, %v1477
        %v1946 = vmul.f32 %v1882, %v1479
        %v1947 = vmul.f32 %v1883, %v1481
        %v1948 = vmul.f32 %v1884, %v1483
        %v1949 = vmul.f32 %v1885, %v1485
        %v1950 = vmul.f32 %v1886, %v1487
        %v1951 = vmul.f32 %v1887, %v1489
        %v1952 = vmul.f32 %v1888, %v1491
        %v1953 = vmul.f32 %v1889, %v1493
        %v1954 = vmul.f32 %v1890, %v1495
        %v1955 = vmul.f32 %v1891, %v1497
        %v1956 = vmul.f32 %v1892, %v1499
        %v1957 = vmul.f32 %v1893, %v1501
        %v1958 = vmul.f32 %v1894, %v1503
        %v1959 = vmul.f32 %v1895, %v1505
        %v1960 = vmul.f32 %v1896, %v1507
        %v1961 = vmul.f32 %v1897, %v1509
        %v1962 = vmul.f32 %v1898, %v1511
        %v1963 = vmul.f32 %v1899, %v1513
        %v1964 = vmul.f32 %v1900, %v1515
        %v1965 = vmul.f32 %v1901, %v1517
        %v1966 = vadd.f32 %v1902, 0.2548296
        %v1967 = vadd.f32 %v1903, 0.2548296
        %v1968 = vadd.f32 %v1904, 0.2548296
        %v1969 = vadd.f32 %v1905, 0.2548296
        %v1970 = vadd.f32 %v1906, 0.2548296
        %v1971 = vadd.f32 %v1907, 0.2548296
        %v1972 = vadd.f32 %v1908, 0.2548296
        %v1973 = vadd.f32 %v1909, 0.2548296
        %v1974 = vadd.f32 %v1910, 0.2548296
        %v1975 = vadd.f32 %v1911, 0.2548296
        %v1976 = vadd.f32 %v1912, 0.2548296
        %v1977 = vadd.f32 %v1913, 0.2548296
        %v1978 = vadd.f32 %v1914, 0.2548296
        %v1979 = vadd.f32 %v1915, 0.2548296
        %v1980 = vadd.f32 %v1916, 0.2548296
        %v1981 = vadd.f32 %v1917, 0.2548296
        %v1982 = vadd.f32 %v1918, 0.2548296
        %v1983 = vadd.f32 %v1919, 0.2548296
        %v1984 = vadd.f32 %v1920, 0.2548296
        %v1985 = vadd.f32 %v1921, 0.2548296
        %v1986 = vadd.f32 %v1922, 0.2548296
        %v1987 = vadd.f32 %v1923, 0.2548296
        %v1988 = vadd.f32 %v1924, 0.2548296
        %v1989 = vadd.f32 %v1925, 0.2548296
        %v1990 = vadd.f32 %v1926, 0.2548296
        %v1991 = vadd.f32 %v1927, 0.2548296
        %v1992 = vadd.f32 %v1928, 0.2548296
        %v1993 = vadd.f32 %v1929, 0.2548296
        %v1994 = vadd.f32 %v1930, 0.2548296
        %v1995 = vadd.f32 %v1931, 0.2548296
        %v1996 = vadd.f32 %v1932, 0.2548296
        %v1997 = vadd.f32 %v1933, 0.2548296
        %v1998 = vadd.f32 %v1934, 0.2548296
        %v1999 = vadd.f32 %v1935, 0.2548296
        %v2000 = vadd.f32 %v1936, 0.2548296
        %v2001 = vadd.f32 %v1937, 0.2548296
        %v2002 = vadd.f32 %v1938, 0.2548296
        %v2003 = vadd.f32 %v1939, 0.2548296
        %v2004 = vadd.f32 %v1940, 0.2548296
        %v2005 = vadd.f32 %v1941, 0.2548296
        %v2006 = vadd.f32 %v1942, 0.2548296
        %v2007 = vadd.f32 %v1943, 0.2548296
        %v2008 = vadd.f32 %v1944, 0.2548296
        %v2009 = vadd.f32 %v1945, 0.2548296
        %v2010 = vadd.f32 %v1946, 0.2548296
        %v2011 = vadd.f32 %v1947, 0.2548296
        %v2012 = vadd.f32 %v1948, 0.2548296
        %v2013 = vadd.f32 %v1949, 0.2548296
        %v2014 = vadd.f32 %v1950, 0.2548296
        %v2015 = vadd.f32 %v1951, 0.2548296
        %v2016 = vadd.f32 %v1952, 0.2548296
        %v2017 = vadd.f32 %v1953, 0.2548296
        %v2018 = vadd.f32 %v1954, 0.2548296
        %v2019 = vadd.f32 %v1955, 0.2548296
        %v2020 = vadd.f32 %v1956, 0.2548296
        %v2021 = vadd.f32 %v1957, 0.2548296
        %v2022 = vadd.f32 %v1958, 0.2548296
        %v2023 = vadd.f32 %v1959, 0.2548296
        %v2024 = vadd.f32 %v1960, 0.2548296
        %v2025 = vadd.f32 %v1961, 0.2548296
        %v2026 = vadd.f32 %v1962, 0.2548296
        %v2027 = vadd.f32 %v1963, 0.2548296
        %v2028 = vadd.f32 %v1964, 0.2548296
        %v2029 = vadd.f32 %v1965, 0.2548296
        %v2030 = vmul.f32 %v1966, %v1391
        %v2031 = vmul.f32 %v1967, %v1393
        %v2032 = vmul.f32 %v1968, %v1395
        %v2033 = vmul.f32 %v1969, %v1397
        %v2034 = vmul.f32 %v1970, %v1399
        %v2035 = vmul.f32 %v1971, %v1401
        %v2036 = vmul.f32 %v1972, %v1403
        %v2037 = vmul.f32 %v1973, %v1405
        %v2038 = vmul.f32 %v1974, %v1407
        %v2039 = vmul.f32 %v1975, %v1409
        %v2040 = vmul.f32 %v1976, %v1411
        %v2041 = vmul.f32 %v1977, %v1413
        %v2042 = vmul.f32 %v1978, %v1415
        %v2043 = vmul.f32 %v1979, %v1417
        %v2044 = vmul.f32 %v1980, %v1419
        %v2045 = vmul.f32 %v1981, %v1421
        %v2046 = vmul.f32 %v1982, %v1423
        %v2047 = vmul.f32 %v1983, %v1425
        %v2048 = vmul.f32 %v1984, %v1427
        %v2049 = vmul.f32 %v1985, %v1429
        %v2050 = vmul.f32 %v1986, %v1431
        %v2051 = vmul.f32 %v1987, %v1433
        %v2052 = vmul.f32 %v1988, %v1435
        %v2053 = vmul.f32 %v1989, %v1437
        %v2054 = vmul.f32 %v1990, %v1439
        %v2055 = vmul.f32 %v1991, %v1441
        %v2056 = vmul.f32 %v1992, %v1443
        %v2057 = vmul.f32 %v1993, %v1445
        %v2058 = vmul.f32 %v1994, %v1447
        %v2059 = vmul.f32 %v1995, %v1449
        %v2060 = vmul.f32 %v1996, %v1451
        %v2061 = vmul.f32 %v1997, %v1453
        %v2062 = vmul.f32 %v1998, %v1455
        %v2063 = vmul.f32 %v1999, %v1457
        %v2064 = vmul.f32 %v2000, %v1459
        %v2065 = vmul.f32 %v2001, %v1461
        %v2066 = vmul.f32 %v2002, %v1463
        %v2067 = vmul.f32 %v2003, %v1465
        %v2068 = vmul.f32 %v2004, %v1467
        %v2069 = vmul.f32 %v2005, %v1469
        %v2070 = vmul.f32 %v2006, %v1471
        %v2071 = vmul.f32 %v2007, %v1473
        %v2072 = vmul.f32 %v2008, %v1475
        %v2073 = vmul.f32 %v2009, %v1477
        %v2074 = vmul.f32 %v2010, %v1479
        %v2075 = vmul.f32 %v2011, %v1481
        %v2076 = vmul.f32 %v2012, %v1483
        %v2077 = vmul.f32 %v2013, %v1485
        %v2078 = vmul.f32 %v2014, %v1487
        %v2079 = vmul.f32 %v2015, %v1489
        %v2080 = vmul.f32 %v2016, %v1491
        %v2081 = vmul.f32 %v2017, %v1493
        %v2082 = vmul.f32 %v2018, %v1495
        %v2083 = vmul.f32 %v2019, %v1497
        %v2084 = vmul.f32 %v2020, %v1499
        %v2085 = vmul.f32 %v2021, %v1501
        %v2086 = vmul.f32 %v2022, %v1503
        %v2087 = vmul.f32 %v2023, %v1505
        %v2088 = vmul.f32 %v2024, %v1507
        %v2089 = vmul.f32 %v2025, %v1509
        %v2090 = vmul.f32 %v2026, %v1511
        %v2091 = vmul.f32 %v2027, %v1513
        %v2092 = vmul.f32 %v2028, %v1515
        %v2093 = vmul.f32 %v2029, %v1517
        %v2094 = vsub.f32 0.0, %v1198
        %v2095 = vsub.f32 0.0, %v1199
        %v2096 = vsub.f32 0.0, %v1200
        %v2097 = vsub.f32 0.0, %v1201
        %v2098 = vsub.f32 0.0, %v1202
        %v2099 = vsub.f32 0.0, %v1203
        %v2100 = vsub.f32 0.0, %v1204
        %v2101 = vsub.f32 0.0, %v1205
        %v2102 = vsub.f32 0.0, %v1206
        %v2103 = vsub.f32 0.0, %v1207
        %v2104 = vsub.f32 0.0, %v1208
        %v2105 = vsub.f32 0.0, %v1209
        %v2106 = vsub.f32 0.0, %v1210
        %v2107 = vsub.f32 0.0, %v1211
        %v2108 = vsub.f32 0.0, %v1212
        %v2109 = vsub.f32 0.0, %v1213
        %v2110 = vsub.f32 0.0, %v1214
        %v2111 = vsub.f32 0.0, %v1215
        %v2112 = vsub.f32 0.0, %v1216
        %v2113 = vsub.f32 0.0, %v1217
        %v2114 = vsub.f32 0.0, %v1218
        %v2115 = vsub.f32 0.0, %v1219
        %v2116 = vsub.f32 0.0, %v1220
        %v2117 = vsub.f32 0.0, %v1221
        %v2118 = vsub.f32 0.0, %v1222
        %v2119 = vsub.f32 0.0, %v1223
        %v2120 = vsub.f32 0.0, %v1224
        %v2121 = vsub.f32 0.0, %v1225
        %v2122 = vsub.f32 0.0, %v1226
        %v2123 = vsub.f32 0.0, %v1227
        %v2124 = vsub.f32 0.0, %v1228
        %v2125 = vsub.f32 0.0, %v1229
        %v2126 = vsub.f32 0.0, %v1230
        %v2127 = vsub.f32 0.0, %v1231
        %v2128 = vsub.f32 0.0, %v1232
        %v2129 = vsub.f32 0.0, %v1233
        %v2130 = vsub.f32 0.0, %v1234
        %v2131 = vsub.f32 0.0, %v1235
        %v2132 = vsub.f32 0.0, %v1236
        %v2133 = vsub.f32 0.0, %v1237
        %v2134 = vsub.f32 0.0, %v1238
        %v2135 = vsub.f32 0.0, %v1239
        %v2136 = vsub.f32 0.0, %v1240
        %v2137 = vsub.f32 0.0, %v1241
        %v2138 = vsub.f32 0.0, %v1242
        %v2139 = vsub.f32 0.0, %v1243
        %v2140 = vsub.f32 0.0, %v1244
        %v2141 = vsub.f32 0.0, %v1245
        %v2142 = vsub.f32 0.0, %v1246
        %v2143 = vsub.f32 0.0, %v1247
        %v2144 = vsub.f32 0.0, %v1248
        %v2145 = vsub.f32 0.0, %v1249
        %v2146 = vsub.f32 0.0, %v1250
        %v2147 = vsub.f32 0.0, %v1251
        %v2148 = vsub.f32 0.0, %v1252
        %v2149 = vsub.f32 0.0, %v1253
        %v2150 = vsub.f32 0.0, %v1254
        %v2151 = vsub.f32 0.0, %v1255
        %v2152 = vsub.f32 0.0, %v1256
        %v2153 = vsub.f32 0.0, %v1257
        %v2154 = vsub.f32 0.0, %v1258
        %v2155 = vsub.f32 0.0, %v1259
        %v2156 = vsub.f32 0.0, %v1260
        %v2157 = vsub.f32 0.0, %v1261
        %v2158 = vmul.f32 %v2094, %v1198
        %v2159 = vmul.f32 %v2095, %v1199
        %v2160 = vmul.f32 %v2096, %v1200
        %v2161 = vmul.f32 %v2097, %v1201
        %v2162 = vmul.f32 %v2098, %v1202
        %v2163 = vmul.f32 %v2099, %v1203
        %v2164 = vmul.f32 %v2100, %v1204
        %v2165 = vmul.f32 %v2101, %v1205
        %v2166 = vmul.f32 %v2102, %v1206
        %v2167 = vmul.f32 %v2103, %v1207
        %v2168 = vmul.f32 %v2104, %v1208
        %v2169 = vmul.f32 %v2105, %v1209
        %v2170 = vmul.f32 %v2106, %v1210
        %v2171 = vmul.f32 %v2107, %v1211
        %v2172 = vmul.f32 %v2108, %v1212
        %v2173 = vmul.f32 %v2109, %v1213
        %v2174 = vmul.f32 %v2110, %v1214
        %v2175 = vmul.f32 %v2111, %v1215
        %v2176 = vmul.f32 %v2112, %v1216
        %v2177 = vmul.f32 %v2113, %v1217
        %v2178 = vmul.f32 %v2114, %v1218
        %v2179 = vmul.f32 %v2115, %v1219
        %v2180 = vmul.f32 %v2116, %v1220
        %v2181 = vmul.f32 %v2117, %v1221
        %v2182 = vmul.f32 %v2118, %v1222
        %v2183 = vmul.f32 %v2119, %v1223
        %v2184 = vmul.f32 %v2120, %v1224
        %v2185 = vmul.f32 %v2121, %v1225
        %v2186 = vmul.f32 %v2122, %v1226
        %v2187 = vmul.f32 %v2123, %v1227
        %v2188 = vmul.f32 %v2124, %v1228
        %v2189 = vmul.f32 %v2125, %v1229
        %v2190 = vmul.f32 %v2126, %v1230
        %v2191 = vmul.f32 %v2127, %v1231
        %v2192 = vmul.f32 %v2128, %v1232
        %v2193 = vmul.f32 %v2129, %v1233
        %v2194 = vmul.f32 %v2130, %v1234
        %v2195 = vmul.f32 %v2131, %v1235
        %v2196 = vmul.f32 %v2132, %v1236
        %v2197 = vmul.f32 %v2133, %v1237
        %v2198 = vmul.f32 %v2134, %v1238
        %v2199 = vmul.f32 %v2135, %v1239
        %v2200 = vmul.f32 %v2136, %v1240
        %v2201 = vmul.f32 %v2137, %v1241
        %v2202 = vmul.f32 %v2138, %v1242
        %v2203 = vmul.f32 %v2139, %v1243
        %v2204 = vmul.f32 %v2140, %v1244
        %v2205 = vmul.f32 %v2141, %v1245
        %v2206 = vmul.f32 %v2142, %v1246
        %v2207 = vmul.f32 %v2143, %v1247
        %v2208 = vmul.f32 %v2144, %v1248
        %v2209 = vmul.f32 %v2145, %v1249
        %v2210 = vmul.f32 %v2146, %v1250
        %v2211 = vmul.f32 %v2147, %v1251
        %v2212 = vmul.f32 %v2148, %v1252
        %v2213 = vmul.f32 %v2149, %v1253
        %v2214 = vmul.f32 %v2150, %v1254
        %v2215 = vmul.f32 %v2151, %v1255
        %v2216 = vmul.f32 %v2152, %v1256
        %v2217 = vmul.f32 %v2153, %v1257
        %v2218 = vmul.f32 %v2154, %v1258
        %v2219 = vmul.f32 %v2155, %v1259
        %v2220 = vmul.f32 %v2156, %v1260
        %v2221 = vmul.f32 %v2157, %v1261
        %v2222 = vmul.f32 %v2158, 1.442695
        %v2223 = vpow.pop %v2222
        %v2224 = vmul.f32 %v2159, 1.442695
        %v2225 = vpow.pop %v2224
        %v2226 = vmul.f32 %v2160, 1.442695
        %v2227 = vpow.pop %v2226
        %v2228 = vmul.f32 %v2161, 1.442695
        %v2229 = vpow.pop %v2228
        %v2230 = vmul.f32 %v2162, 1.442695
        %v2231 = vpow.pop %v2230
        %v2232 = vmul.f32 %v2163, 1.442695
        %v2233 = vpow.pop %v2232
        %v2234 = vmul.f32 %v2164, 1.442695
        %v2235 = vpow.pop %v2234
        %v2236 = vmul.f32 %v2165, 1.442695
        %v2237 = vpow.pop %v2236
        %v2238 = vmul.f32 %v2166, 1.442695
        %v2239 = vpow.pop %v2238
        %v2240 = vmul.f32 %v2167, 1.442695
        %v2241 = vpow.pop %v2240
        %v2242 = vmul.f32 %v2168, 1.442695
        %v2243 = vpow.pop %v2242
        %v2244 = vmul.f32 %v2169, 1.442695
        %v2245 = vpow.pop %v2244
        %v2246 = vmul.f32 %v2170, 1.442695
        %v2247 = vpow.pop %v2246
        %v2248 = vmul.f32 %v2171, 1.442695
        %v2249 = vpow.pop %v2248
        %v2250 = vmul.f32 %v2172, 1.442695
        %v2251 = vpow.pop %v2250
        %v2252 = vmul.f32 %v2173, 1.442695
        %v2253 = vpow.pop %v2252
        %v2254 = vmul.f32 %v2174, 1.442695
        %v2255 = vpow.pop %v2254
        %v2256 = vmul.f32 %v2175, 1.442695
        %v2257 = vpow.pop %v2256
        %v2258 = vmul.f32 %v2176, 1.442695
        %v2259 = vpow.pop %v2258
        %v2260 = vmul.f32 %v2177, 1.442695
        %v2261 = vpow.pop %v2260
        %v2262 = vmul.f32 %v2178, 1.442695
        %v2263 = vpow.pop %v2262
        %v2264 = vmul.f32 %v2179, 1.442695
        %v2265 = vpow.pop %v2264
        %v2266 = vmul.f32 %v2180, 1.442695
        %v2267 = vpow.pop %v2266
        %v2268 = vmul.f32 %v2181, 1.442695
        %v2269 = vpow.pop %v2268
        %v2270 = vmul.f32 %v2182, 1.442695
        %v2271 = vpow.pop %v2270
        %v2272 = vmul.f32 %v2183, 1.442695
        %v2273 = vpow.pop %v2272
        %v2274 = vmul.f32 %v2184, 1.442695
        %v2275 = vpow.pop %v2274
        %v2276 = vmul.f32 %v2185, 1.442695
        %v2277 = vpow.pop %v2276
        %v2278 = vmul.f32 %v2186, 1.442695
        %v2279 = vpow.pop %v2278
        %v2280 = vmul.f32 %v2187, 1.442695
        %v2281 = vpow.pop %v2280
        %v2282 = vmul.f32 %v2188, 1.442695
        %v2283 = vpow.pop %v2282
        %v2284 = vmul.f32 %v2189, 1.442695
        %v2285 = vpow.pop %v2284
        %v2286 = vmul.f32 %v2190, 1.442695
        %v2287 = vpow.pop %v2286
        %v2288 = vmul.f32 %v2191, 1.442695
        %v2289 = vpow.pop %v2288
        %v2290 = vmul.f32 %v2192, 1.442695
        %v2291 = vpow.pop %v2290
        %v2292 = vmul.f32 %v2193, 1.442695
        %v2293 = vpow.pop %v2292
        %v2294 = vmul.f32 %v2194, 1.442695
        %v2295 = vpow.pop %v2294
        %v2296 = vmul.f32 %v2195, 1.442695
        %v2297 = vpow.pop %v2296
        %v2298 = vmul.f32 %v2196, 1.442695
        %v2299 = vpow.pop %v2298
        %v2300 = vmul.f32 %v2197, 1.442695
        %v2301 = vpow.pop %v2300
        %v2302 = vmul.f32 %v2198, 1.442695
        %v2303 = vpow.pop %v2302
        %v2304 = vmul.f32 %v2199, 1.442695
        %v2305 = vpow.pop %v2304
        %v2306 = vmul.f32 %v2200, 1.442695
        %v2307 = vpow.pop %v2306
        %v2308 = vmul.f32 %v2201, 1.442695
        %v2309 = vpow.pop %v2308
        %v2310 = vmul.f32 %v2202, 1.442695
        %v2311 = vpow.pop %v2310
        %v2312 = vmul.f32 %v2203, 1.442695
        %v2313 = vpow.pop %v2312
        %v2314 = vmul.f32 %v2204, 1.442695
        %v2315 = vpow.pop %v2314
        %v2316 = vmul.f32 %v2205, 1.442695
        %v2317 = vpow.pop %v2316
        %v2318 = vmul.f32 %v2206, 1.442695
        %v2319 = vpow.pop %v2318
        %v2320 = vmul.f32 %v2207, 1.442695
        %v2321 = vpow.pop %v2320
        %v2322 = vmul.f32 %v2208, 1.442695
        %v2323 = vpow.pop %v2322
        %v2324 = vmul.f32 %v2209, 1.442695
        %v2325 = vpow.pop %v2324
        %v2326 = vmul.f32 %v2210, 1.442695
        %v2327 = vpow.pop %v2326
        %v2328 = vmul.f32 %v2211, 1.442695
        %v2329 = vpow.pop %v2328
        %v2330 = vmul.f32 %v2212, 1.442695
        %v2331 = vpow.pop %v2330
        %v2332 = vmul.f32 %v2213, 1.442695
        %v2333 = vpow.pop %v2332
        %v2334 = vmul.f32 %v2214, 1.442695
        %v2335 = vpow.pop %v2334
        %v2336 = vmul.f32 %v2215, 1.442695
        %v2337 = vpow.pop %v2336
        %v2338 = vmul.f32 %v2216, 1.442695
        %v2339 = vpow.pop %v2338
        %v2340 = vmul.f32 %v2217, 1.442695
        %v2341 = vpow.pop %v2340
        %v2342 = vmul.f32 %v2218, 1.442695
        %v2343 = vpow.pop %v2342
        %v2344 = vmul.f32 %v2219, 1.442695
        %v2345 = vpow.pop %v2344
        %v2346 = vmul.f32 %v2220, 1.442695
        %v2347 = vpow.pop %v2346
        %v2348 = vmul.f32 %v2221, 1.442695
        %v2349 = vpow.pop %v2348
        %v2350 = vmul.f32 %v2030, %v2223
        %v2351 = vmul.f32 %v2031, %v2225
        %v2352 = vmul.f32 %v2032, %v2227
        %v2353 = vmul.f32 %v2033, %v2229
        %v2354 = vmul.f32 %v2034, %v2231
        %v2355 = vmul.f32 %v2035, %v2233
        %v2356 = vmul.f32 %v2036, %v2235
        %v2357 = vmul.f32 %v2037, %v2237
        %v2358 = vmul.f32 %v2038, %v2239
        %v2359 = vmul.f32 %v2039, %v2241
        %v2360 = vmul.f32 %v2040, %v2243
        %v2361 = vmul.f32 %v2041, %v2245
        %v2362 = vmul.f32 %v2042, %v2247
        %v2363 = vmul.f32 %v2043, %v2249
        %v2364 = vmul.f32 %v2044, %v2251
        %v2365 = vmul.f32 %v2045, %v2253
        %v2366 = vmul.f32 %v2046, %v2255
        %v2367 = vmul.f32 %v2047, %v2257
        %v2368 = vmul.f32 %v2048, %v2259
        %v2369 = vmul.f32 %v2049, %v2261
        %v2370 = vmul.f32 %v2050, %v2263
        %v2371 = vmul.f32 %v2051, %v2265
        %v2372 = vmul.f32 %v2052, %v2267
        %v2373 = vmul.f32 %v2053, %v2269
        %v2374 = vmul.f32 %v2054, %v2271
        %v2375 = vmul.f32 %v2055, %v2273
        %v2376 = vmul.f32 %v2056, %v2275
        %v2377 = vmul.f32 %v2057, %v2277
        %v2378 = vmul.f32 %v2058, %v2279
        %v2379 = vmul.f32 %v2059, %v2281
        %v2380 = vmul.f32 %v2060, %v2283
        %v2381 = vmul.f32 %v2061, %v2285
        %v2382 = vmul.f32 %v2062, %v2287
        %v2383 = vmul.f32 %v2063, %v2289
        %v2384 = vmul.f32 %v2064, %v2291
        %v2385 = vmul.f32 %v2065, %v2293
        %v2386 = vmul.f32 %v2066, %v2295
        %v2387 = vmul.f32 %v2067, %v2297
        %v2388 = vmul.f32 %v2068, %v2299
        %v2389 = vmul.f32 %v2069, %v2301
        %v2390 = vmul.f32 %v2070, %v2303
        %v2391 = vmul.f32 %v2071, %v2305
        %v2392 = vmul.f32 %v2072, %v2307
        %v2393 = vmul.f32 %v2073, %v2309
        %v2394 = vmul.f32 %v2074, %v2311
        %v2395 = vmul.f32 %v2075, %v2313
        %v2396 = vmul.f32 %v2076, %v2315
        %v2397 = vmul.f32 %v2077, %v2317
        %v2398 = vmul.f32 %v2078, %v2319
        %v2399 = vmul.f32 %v2079, %v2321
        %v2400 = vmul.f32 %v2080, %v2323
        %v2401 = vmul.f32 %v2081, %v2325
        %v2402 = vmul.f32 %v2082, %v2327
        %v2403 = vmul.f32 %v2083, %v2329
        %v2404 = vmul.f32 %v2084, %v2331
        %v2405 = vmul.f32 %v2085, %v2333
        %v2406 = vmul.f32 %v2086, %v2335
        %v2407 = vmul.f32 %v2087, %v2337
        %v2408 = vmul.f32 %v2088, %v2339
        %v2409 = vmul.f32 %v2089, %v2341
        %v2410 = vmul.f32 %v2090, %v2343
        %v2411 = vmul.f32 %v2091, %v2345
        %v2412 = vmul.f32 %v2092, %v2347
        %v2413 = vmul.f32 %v2093, %v2349
        %v2414 = vsub.f32 1.0, %v2350
        %v2415 = vsub.f32 1.0, %v2351
        %v2416 = vsub.f32 1.0, %v2352
        %v2417 = vsub.f32 1.0, %v2353
        %v2418 = vsub.f32 1.0, %v2354
        %v2419 = vsub.f32 1.0, %v2355
        %v2420 = vsub.f32 1.0, %v2356
        %v2421 = vsub.f32 1.0, %v2357
        %v2422 = vsub.f32 1.0, %v2358
        %v2423 = vsub.f32 1.0, %v2359
        %v2424 = vsub.f32 1.0, %v2360
        %v2425 = vsub.f32 1.0, %v2361
        %v2426 = vsub.f32 1.0, %v2362
        %v2427 = vsub.f32 1.0, %v2363
        %v2428 = vsub.f32 1.0, %v2364
        %v2429 = vsub.f32 1.0, %v2365
        %v2430 = vsub.f32 1.0, %v2366
        %v2431 = vsub.f32 1.0, %v2367
        %v2432 = vsub.f32 1.0, %v2368
        %v2433 = vsub.f32 1.0, %v2369
        %v2434 = vsub.f32 1.0, %v2370
        %v2435 = vsub.f32 1.0, %v2371
        %v2436 = vsub.f32 1.0, %v2372
        %v2437 = vsub.f32 1.0, %v2373
        %v2438 = vsub.f32 1.0, %v2374
        %v2439 = vsub.f32 1.0, %v2375
        %v2440 = vsub.f32 1.0, %v2376
        %v2441 = vsub.f32 1.0, %v2377
        %v2442 = vsub.f32 1.0, %v2378
        %v2443 = vsub.f32 1.0, %v2379
        %v2444 = vsub.f32 1.0, %v2380
        %v2445 = vsub.f32 1.0, %v2381
        %v2446 = vsub.f32 1.0, %v2382
        %v2447 = vsub.f32 1.0, %v2383
        %v2448 = vsub.f32 1.0, %v2384
        %v2449 = vsub.f32 1.0, %v2385
        %v2450 = vsub.f32 1.0, %v2386
        %v2451 = vsub.f32 1.0, %v2387
        %v2452 = vsub.f32 1.0, %v2388
        %v2453 = vsub.f32 1.0, %v2389
        %v2454 = vsub.f32 1.0, %v2390
        %v2455 = vsub.f32 1.0, %v2391
        %v2456 = vsub.f32 1.0, %v2392
        %v2457 = vsub.f32 1.0, %v2393
        %v2458 = vsub.f32 1.0, %v2394
        %v2459 = vsub.f32 1.0, %v2395
        %v2460 = vsub.f32 1.0, %v2396
        %v2461 = vsub.f32 1.0, %v2397
        %v2462 = vsub.f32 1.0, %v2398
        %v2463 = vsub.f32 1.0, %v2399
        %v2464 = vsub.f32 1.0, %v2400
        %v2465 = vsub.f32 1.0, %v2401
        %v2466 = vsub.f32 1.0, %v2402
        %v2467 = vsub.f32 1.0, %v2403
        %v2468 = vsub.f32 1.0, %v2404
        %v2469 = vsub.f32 1.0, %v2405
        %v2470 = vsub.f32 1.0, %v2406
        %v2471 = vsub.f32 1.0, %v2407
        %v2472 = vsub.f32 1.0, %v2408
        %v2473 = vsub.f32 1.0, %v2409
        %v2474 = vsub.f32 1.0, %v2410
        %v2475 = vsub.f32 1.0, %v2411
        %v2476 = vsub.f32 1.0, %v2412
        %v2477 = vsub.f32 1.0, %v2413
        %vm2478 = vcmp.ge.f32.partialorder %v1134, 0.0
        %vm2479 = vcmp.ge.f32.partialorder %v1135, 0.0
        %vm2480 = vcmp.ge.f32.partialorder %v1136, 0.0
        %vm2481 = vcmp.ge.f32.partialorder %v1137, 0.0
        %vm2482 = vcmp.ge.f32.partialorder %v1138, 0.0
        %vm2483 = vcmp.ge.f32.partialorder %v1139, 0.0
        %vm2484 = vcmp.ge.f32.partialorder %v1140, 0.0
        %vm2485 = vcmp.ge.f32.partialorder %v1141, 0.0
        %vm2486 = vcmp.ge.f32.partialorder %v1142, 0.0
        %vm2487 = vcmp.ge.f32.partialorder %v1143, 0.0
        %vm2488 = vcmp.ge.f32.partialorder %v1144, 0.0
        %vm2489 = vcmp.ge.f32.partialorder %v1145, 0.0
        %vm2490 = vcmp.ge.f32.partialorder %v1146, 0.0
        %vm2491 = vcmp.ge.f32.partialorder %v1147, 0.0
        %vm2492 = vcmp.ge.f32.partialorder %v1148, 0.0
        %vm2493 = vcmp.ge.f32.partialorder %v1149, 0.0
        %vm2494 = vcmp.ge.f32.partialorder %v1150, 0.0
        %vm2495 = vcmp.ge.f32.partialorder %v1151, 0.0
        %vm2496 = vcmp.ge.f32.partialorder %v1152, 0.0
        %vm2497 = vcmp.ge.f32.partialorder %v1153, 0.0
        %vm2498 = vcmp.ge.f32.partialorder %v1154, 0.0
        %vm2499 = vcmp.ge.f32.partialorder %v1155, 0.0
        %vm2500 = vcmp.ge.f32.partialorder %v1156, 0.0
        %vm2501 = vcmp.ge.f32.partialorder %v1157, 0.0
        %vm2502 = vcmp.ge.f32.partialorder %v1158, 0.0
        %vm2503 = vcmp.ge.f32.partialorder %v1159, 0.0
        %vm2504 = vcmp.ge.f32.partialorder %v1160, 0.0
        %vm2505 = vcmp.ge.f32.partialorder %v1161, 0.0
        %vm2506 = vcmp.ge.f32.partialorder %v1162, 0.0
        %vm2507 = vcmp.ge.f32.partialorder %v1163, 0.0
        %vm2508 = vcmp.ge.f32.partialorder %v1164, 0.0
        %vm2509 = vcmp.ge.f32.partialorder %v1165, 0.0
        %vm2510 = vcmp.ge.f32.partialorder %v1166, 0.0
        %vm2511 = vcmp.ge.f32.partialorder %v1167, 0.0
        %vm2512 = vcmp.ge.f32.partialorder %v1168, 0.0
        %vm2513 = vcmp.ge.f32.partialorder %v1169, 0.0
        %vm2514 = vcmp.ge.f32.partialorder %v1170, 0.0
        %vm2515 = vcmp.ge.f32.partialorder %v1171, 0.0
        %vm2516 = vcmp.ge.f32.partialorder %v1172, 0.0
        %vm2517 = vcmp.ge.f32.partialorder %v1173, 0.0
        %vm2518 = vcmp.ge.f32.partialorder %v1174, 0.0
        %vm2519 = vcmp.ge.f32.partialorder %v1175, 0.0
        %vm2520 = vcmp.ge.f32.partialorder %v1176, 0.0
        %vm2521 = vcmp.ge.f32.partialorder %v1177, 0.0
        %vm2522 = vcmp.ge.f32.partialorder %v1178, 0.0
        %vm2523 = vcmp.ge.f32.partialorder %v1179, 0.0
        %vm2524 = vcmp.ge.f32.partialorder %v1180, 0.0
        %vm2525 = vcmp.ge.f32.partialorder %v1181, 0.0
        %vm2526 = vcmp.ge.f32.partialorder %v1182, 0.0
        %vm2527 = vcmp.ge.f32.partialorder %v1183, 0.0
        %vm2528 = vcmp.ge.f32.partialorder %v1184, 0.0
        %vm2529 = vcmp.ge.f32.partialorder %v1185, 0.0
        %vm2530 = vcmp.ge.f32.partialorder %v1186, 0.0
        %vm2531 = vcmp.ge.f32.partialorder %v1187, 0.0
        %vm2532 = vcmp.ge.f32.partialorder %v1188, 0.0
        %vm2533 = vcmp.ge.f32.partialorder %v1189, 0.0
        %vm2534 = vcmp.ge.f32.partialorder %v1190, 0.0
        %vm2535 = vcmp.ge.f32.partialorder %v1191, 0.0
        %vm2536 = vcmp.ge.f32.partialorder %v1192, 0.0
        %vm2537 = vcmp.ge.f32.partialorder %v1193, 0.0
        %vm2538 = vcmp.ge.f32.partialorder %v1194, 0.0
        %vm2539 = vcmp.ge.f32.partialorder %v1195, 0.0
        %vm2540 = vcmp.ge.f32.partialorder %v1196, 0.0
        %vm2541 = vcmp.ge.f32.partialorder %v1197, 0.0
        %v2542 = vsub.f32 0.0, %v2414
        %v2543 = vsub.f32 0.0, %v2415
        %v2544 = vsub.f32 0.0, %v2416
        %v2545 = vsub.f32 0.0, %v2417
        %v2546 = vsub.f32 0.0, %v2418
        %v2547 = vsub.f32 0.0, %v2419
        %v2548 = vsub.f32 0.0, %v2420
        %v2549 = vsub.f32 0.0, %v2421
        %v2550 = vsub.f32 0.0, %v2422
        %v2551 = vsub.f32 0.0, %v2423
        %v2552 = vsub.f32 0.0, %v2424
        %v2553 = vsub.f32 0.0, %v2425
        %v2554 = vsub.f32 0.0, %v2426
        %v2555 = vsub.f32 0.0, %v2427
        %v2556 = vsub.f32 0.0, %v2428
        %v2557 = vsub.f32 0.0, %v2429
        %v2558 = vsub.f32 0.0, %v2430
        %v2559 = vsub.f32 0.0, %v2431
        %v2560 = vsub.f32 0.0, %v2432
        %v2561 = vsub.f32 0.0, %v2433
        %v2562 = vsub.f32 0.0, %v2434
        %v2563 = vsub.f32 0.0, %v2435
        %v2564 = vsub.f32 0.0, %v2436
        %v2565 = vsub.f32 0.0, %v2437
        %v2566 = vsub.f32 0.0, %v2438
        %v2567 = vsub.f32 0.0, %v2439
        %v2568 = vsub.f32 0.0, %v2440
        %v2569 = vsub.f32 0.0, %v2441
        %v2570 = vsub.f32 0.0, %v2442
        %v2571 = vsub.f32 0.0, %v2443
        %v2572 = vsub.f32 0.0, %v2444
        %v2573 = vsub.f32 0.0, %v2445
        %v2574 = vsub.f32 0.0, %v2446
        %v2575 = vsub.f32 0.0, %v2447
        %v2576 = vsub.f32 0.0, %v2448
        %v2577 = vsub.f32 0.0, %v2449
        %v2578 = vsub.f32 0.0, %v2450
        %v2579 = vsub.f32 0.0, %v2451
        %v2580 = vsub.f32 0.0, %v2452
        %v2581 = vsub.f32 0.0, %v2453
        %v2582 = vsub.f32 0.0, %v2454
        %v2583 = vsub.f32 0.0, %v2455
        %v2584 = vsub.f32 0.0, %v2456
        %v2585 = vsub.f32 0.0, %v2457
        %v2586 = vsub.f32 0.0, %v2458
        %v2587 = vsub.f32 0.0, %v2459
        %v2588 = vsub.f32 0.0, %v2460
        %v2589 = vsub.f32 0.0, %v2461
        %v2590 = vsub.f32 0.0, %v2462
        %v2591 = vsub.f32 0.0, %v2463
        %v2592 = vsub.f32 0.0, %v2464
        %v2593 = vsub.f32 0.0, %v2465
        %v2594 = vsub.f32 0.0, %v2466
        %v2595 = vsub.f32 0.0, %v2467
        %v2596 = vsub.f32 0.0, %v2468
        %v2597 = vsub.f32 0.0, %v2469
        %v2598 = vsub.f32 0.0, %v2470
        %v2599 = vsub.f32 0.0, %v2471
        %v2600 = vsub.f32 0.0, %v2472
        %v2601 = vsub.f32 0.0, %v2473
        %v2602 = vsub.f32 0.0, %v2474
        %v2603 = vsub.f32 0.0, %v2475
        %v2604 = vsub.f32 0.0, %v2476
        %v2605 = vsub.f32 0.0, %v2477
        %v2606 = vsel %vm2478, %v2414, %v2542
        %v2607 = vsel %vm2479, %v2415, %v2543
        %v2608 = vsel %vm2480, %v2416, %v2544
        %v2609 = vsel %vm2481, %v2417, %v2545
        %v2610 = vsel %vm2482, %v2418, %v2546
        %v2611 = vsel %vm2483, %v2419, %v2547
        %v2612 = vsel %vm2484, %v2420, %v2548
        %v2613 = vsel %vm2485, %v2421, %v2549
        %v2614 = vsel %vm2486, %v2422, %v2550
        %v2615 = vsel %vm2487, %v2423, %v2551
        %v2616 = vsel %vm2488, %v2424, %v2552
        %v2617 = vsel %vm2489, %v2425, %v2553
        %v2618 = vsel %vm2490, %v2426, %v2554
        %v2619 = vsel %vm2491, %v2427, %v2555
        %v2620 = vsel %vm2492, %v2428, %v2556
        %v2621 = vsel %vm2493, %v2429, %v2557
        %v2622 = vsel %vm2494, %v2430, %v2558
        %v2623 = vsel %vm2495, %v2431, %v2559
        %v2624 = vsel %vm2496, %v2432, %v2560
        %v2625 = vsel %vm2497, %v2433, %v2561
        %v2626 = vsel %vm2498, %v2434, %v2562
        %v2627 = vsel %vm2499, %v2435, %v2563
        %v2628 = vsel %vm2500, %v2436, %v2564
        %v2629 = vsel %vm2501, %v2437, %v2565
        %v2630 = vsel %vm2502, %v2438, %v2566
        %v2631 = vsel %vm2503, %v2439, %v2567
        %v2632 = vsel %vm2504, %v2440, %v2568
        %v2633 = vsel %vm2505, %v2441, %v2569
        %v2634 = vsel %vm2506, %v2442, %v2570
        %v2635 = vsel %vm2507, %v2443, %v2571
        %v2636 = vsel %vm2508, %v2444, %v2572
        %v2637 = vsel %vm2509, %v2445, %v2573
        %v2638 = vsel %vm2510, %v2446, %v2574
        %v2639 = vsel %vm2511, %v2447, %v2575
        %v2640 = vsel %vm2512, %v2448, %v2576
        %v2641 = vsel %vm2513, %v2449, %v2577
        %v2642 = vsel %vm2514, %v2450, %v2578
        %v2643 = vsel %vm2515, %v2451, %v2579
        %v2644 = vsel %vm2516, %v2452, %v2580
        %v2645 = vsel %vm2517, %v2453, %v2581
        %v2646 = vsel %vm2518, %v2454, %v2582
        %v2647 = vsel %vm2519, %v2455, %v2583
        %v2648 = vsel %vm2520, %v2456, %v2584
        %v2649 = vsel %vm2521, %v2457, %v2585
        %v2650 = vsel %vm2522, %v2458, %v2586
        %v2651 = vsel %vm2523, %v2459, %v2587
        %v2652 = vsel %vm2524, %v2460, %v2588
        %v2653 = vsel %vm2525, %v2461, %v2589
        %v2654 = vsel %vm2526, %v2462, %v2590
        %v2655 = vsel %vm2527, %v2463, %v2591
        %v2656 = vsel %vm2528, %v2464, %v2592
        %v2657 = vsel %vm2529, %v2465, %v2593
        %v2658 = vsel %vm2530, %v2466, %v2594
        %v2659 = vsel %vm2531, %v2467, %v2595
        %v2660 = vsel %vm2532, %v2468, %v2596
        %v2661 = vsel %vm2533, %v2469, %v2597
        %v2662 = vsel %vm2534, %v2470, %v2598
        %v2663 = vsel %vm2535, %v2471, %v2599
        %v2664 = vsel %vm2536, %v2472, %v2600
        %v2665 = vsel %vm2537, %v2473, %v2601
        %v2666 = vsel %vm2538, %v2474, %v2602
        %v2667 = vsel %vm2539, %v2475, %v2603
        %v2668 = vsel %vm2540, %v2476, %v2604
        %v2669 = vsel %vm2541, %v2477, %v2605
        %v2670 = vadd.f32 %v2606, 1.0
        %v2671 = vadd.f32 %v2607, 1.0
        %v2672 = vadd.f32 %v2608, 1.0
        %v2673 = vadd.f32 %v2609, 1.0
        %v2674 = vadd.f32 %v2610, 1.0
        %v2675 = vadd.f32 %v2611, 1.0
        %v2676 = vadd.f32 %v2612, 1.0
        %v2677 = vadd.f32 %v2613, 1.0
        %v2678 = vadd.f32 %v2614, 1.0
        %v2679 = vadd.f32 %v2615, 1.0
        %v2680 = vadd.f32 %v2616, 1.0
        %v2681 = vadd.f32 %v2617, 1.0
        %v2682 = vadd.f32 %v2618, 1.0
        %v2683 = vadd.f32 %v2619, 1.0
        %v2684 = vadd.f32 %v2620, 1.0
        %v2685 = vadd.f32 %v2621, 1.0
        %v2686 = vadd.f32 %v2622, 1.0
        %v2687 = vadd.f32 %v2623, 1.0
        %v2688 = vadd.f32 %v2624, 1.0
        %v2689 = vadd.f32 %v2625, 1.0
        %v2690 = vadd.f32 %v2626, 1.0
        %v2691 = vadd.f32 %v2627, 1.0
        %v2692 = vadd.f32 %v2628, 1.0
        %v2693 = vadd.f32 %v2629, 1.0
        %v2694 = vadd.f32 %v2630, 1.0
        %v2695 = vadd.f32 %v2631, 1.0
        %v2696 = vadd.f32 %v2632, 1.0
        %v2697 = vadd.f32 %v2633, 1.0
        %v2698 = vadd.f32 %v2634, 1.0
        %v2699 = vadd.f32 %v2635, 1.0
        %v2700 = vadd.f32 %v2636, 1.0
        %v2701 = vadd.f32 %v2637, 1.0
        %v2702 = vadd.f32 %v2638, 1.0
        %v2703 = vadd.f32 %v2639, 1.0
        %v2704 = vadd.f32 %v2640, 1.0
        %v2705 = vadd.f32 %v2641, 1.0
        %v2706 = vadd.f32 %v2642, 1.0
        %v2707 = vadd.f32 %v2643, 1.0
        %v2708 = vadd.f32 %v2644, 1.0
        %v2709 = vadd.f32 %v2645, 1.0
        %v2710 = vadd.f32 %v2646, 1.0
        %v2711 = vadd.f32 %v2647, 1.0
        %v2712 = vadd.f32 %v2648, 1.0
        %v2713 = vadd.f32 %v2649, 1.0
        %v2714 = vadd.f32 %v2650, 1.0
        %v2715 = vadd.f32 %v2651, 1.0
        %v2716 = vadd.f32 %v2652, 1.0
        %v2717 = vadd.f32 %v2653, 1.0
        %v2718 = vadd.f32 %v2654, 1.0
        %v2719 = vadd.f32 %v2655, 1.0
        %v2720 = vadd.f32 %v2656, 1.0
        %v2721 = vadd.f32 %v2657, 1.0
        %v2722 = vadd.f32 %v2658, 1.0
        %v2723 = vadd.f32 %v2659, 1.0
        %v2724 = vadd.f32 %v2660, 1.0
        %v2725 = vadd.f32 %v2661, 1.0
        %v2726 = vadd.f32 %v2662, 1.0
        %v2727 = vadd.f32 %v2663, 1.0
        %v2728 = vadd.f32 %v2664, 1.0
        %v2729 = vadd.f32 %v2665, 1.0
        %v2730 = vadd.f32 %v2666, 1.0
        %v2731 = vadd.f32 %v2667, 1.0
        %v2732 = vadd.f32 %v2668, 1.0
        %v2733 = vadd.f32 %v2669, 1.0
        %v2734 = vmul.f32 %v1070, %v2670
        %v2735 = vmul.f32 %v1071, %v2671
        %v2736 = vmul.f32 %v1072, %v2672
        %v2737 = vmul.f32 %v1073, %v2673
        %v2738 = vmul.f32 %v1074, %v2674
        %v2739 = vmul.f32 %v1075, %v2675
        %v2740 = vmul.f32 %v1076, %v2676
        %v2741 = vmul.f32 %v1077, %v2677
        %v2742 = vmul.f32 %v1078, %v2678
        %v2743 = vmul.f32 %v1079, %v2679
        %v2744 = vmul.f32 %v1080, %v2680
        %v2745 = vmul.f32 %v1081, %v2681
        %v2746 = vmul.f32 %v1082, %v2682
        %v2747 = vmul.f32 %v1083, %v2683
        %v2748 = vmul.f32 %v1084, %v2684
        %v2749 = vmul.f32 %v1085, %v2685
        %v2750 = vmul.f32 %v1086, %v2686
        %v2751 = vmul.f32 %v1087, %v2687
        %v2752 = vmul.f32 %v1088, %v2688
        %v2753 = vmul.f32 %v1089, %v2689
        %v2754 = vmul.f32 %v1090, %v2690
        %v2755 = vmul.f32 %v1091, %v2691
        %v2756 = vmul.f32 %v1092, %v2692
        %v2757 = vmul.f32 %v1093, %v2693
        %v2758 = vmul.f32 %v1094, %v2694
        %v2759 = vmul.f32 %v1095, %v2695
        %v2760 = vmul.f32 %v1096, %v2696
        %v2761 = vmul.f32 %v1097, %v2697
        %v2762 = vmul.f32 %v1098, %v2698
        %v2763 = vmul.f32 %v1099, %v2699
        %v2764 = vmul.f32 %v1100, %v2700
        %v2765 = vmul.f32 %v1101, %v2701
        %v2766 = vmul.f32 %v1102, %v2702
        %v2767 = vmul.f32 %v1103, %v2703
        %v2768 = vmul.f32 %v1104, %v2704
        %v2769 = vmul.f32 %v1105, %v2705
        %v2770 = vmul.f32 %v1106, %v2706
        %v2771 = vmul.f32 %v1107, %v2707
        %v2772 = vmul.f32 %v1108, %v2708
        %v2773 = vmul.f32 %v1109, %v2709
        %v2774 = vmul.f32 %v1110, %v2710
        %v2775 = vmul.f32 %v1111, %v2711
        %v2776 = vmul.f32 %v1112, %v2712
        %v2777 = vmul.f32 %v1113, %v2713
        %v2778 = vmul.f32 %v1114, %v2714
        %v2779 = vmul.f32 %v1115, %v2715
        %v2780 = vmul.f32 %v1116, %v2716
        %v2781 = vmul.f32 %v1117, %v2717
        %v2782 = vmul.f32 %v1118, %v2718
        %v2783 = vmul.f32 %v1119, %v2719
        %v2784 = vmul.f32 %v1120, %v2720
        %v2785 = vmul.f32 %v1121, %v2721
        %v2786 = vmul.f32 %v1122, %v2722
        %v2787 = vmul.f32 %v1123, %v2723
        %v2788 = vmul.f32 %v1124, %v2724
        %v2789 = vmul.f32 %v1125, %v2725
        %v2790 = vmul.f32 %v1126, %v2726
        %v2791 = vmul.f32 %v1127, %v2727
        %v2792 = vmul.f32 %v1128, %v2728
        %v2793 = vmul.f32 %v1129, %v2729
        %v2794 = vmul.f32 %v1130, %v2730
        %v2795 = vmul.f32 %v1131, %v2731
        %v2796 = vmul.f32 %v1132, %v2732
        %v2797 = vmul.f32 %v1133, %v2733
        %v2798 = vpack.c.bf16 %v2735, %v2734
        %v2799 = vpack.c.bf16 %v2737, %v2736
        %v2800 = vpack.c.bf16 %v2739, %v2738
        %v2801 = vpack.c.bf16 %v2741, %v2740
        %v2802 = vpack.c.bf16 %v2743, %v2742
        %v2803 = vpack.c.bf16 %v2745, %v2744
        %v2804 = vpack.c.bf16 %v2747, %v2746
        %v2805 = vpack.c.bf16 %v2749, %v2748
        %v2806 = vpack.c.bf16 %v2751, %v2750
        %v2807 = vpack.c.bf16 %v2753, %v2752
        %v2808 = vpack.c.bf16 %v2755, %v2754
        %v2809 = vpack.c.bf16 %v2757, %v2756
        %v2810 = vpack.c.bf16 %v2759, %v2758
        %v2811 = vpack.c.bf16 %v2761, %v2760
        %v2812 = vpack.c.bf16 %v2763, %v2762
        %v2813 = vpack.c.bf16 %v2765, %v2764
        %v2814 = vpack.c.bf16 %v2767, %v2766
        %v2815 = vpack.c.bf16 %v2769, %v2768
        %v2816 = vpack.c.bf16 %v2771, %v2770
        %v2817 = vpack.c.bf16 %v2773, %v2772
        %v2818 = vpack.c.bf16 %v2775, %v2774
        %v2819 = vpack.c.bf16 %v2777, %v2776
        %v2820 = vpack.c.bf16 %v2779, %v2778
        %v2821 = vpack.c.bf16 %v2781, %v2780
        %v2822 = vpack.c.bf16 %v2783, %v2782
        %v2823 = vpack.c.bf16 %v2785, %v2784
        %v2824 = vpack.c.bf16 %v2787, %v2786
        %v2825 = vpack.c.bf16 %v2789, %v2788
        %v2826 = vpack.c.bf16 %v2791, %v2790
        %v2827 = vpack.c.bf16 %v2793, %v2792
        %v2828 = vpack.c.bf16 %v2795, %v2794
        %v2829 = vpack.c.bf16 %v2797, %v2796
        %v2862 = vunpack.c.l.b16 %v2798
        %v2863 = vunpack.c.h.b16 %v2798
        %v2864 = vunpack.c.l.b16 %v2799
        %v2865 = vunpack.c.h.b16 %v2799
        %v2866 = vunpack.c.l.b16 %v2800
        %v2867 = vunpack.c.h.b16 %v2800
        %v2868 = vunpack.c.l.b16 %v2801
        %v2869 = vunpack.c.h.b16 %v2801
        %v2870 = vunpack.c.l.b16 %v2802
        %v2871 = vunpack.c.h.b16 %v2802
        %v2872 = vunpack.c.l.b16 %v2803
        %v2873 = vunpack.c.h.b16 %v2803
        %v2874 = vunpack.c.l.b16 %v2804
        %v2875 = vunpack.c.h.b16 %v2804
        %v2876 = vunpack.c.l.b16 %v2805
        %v2877 = vunpack.c.h.b16 %v2805
        %v2878 = vunpack.c.l.b16 %v2806
        %v2879 = vunpack.c.h.b16 %v2806
        %v2880 = vunpack.c.l.b16 %v2807
        %v2881 = vunpack.c.h.b16 %v2807
        %v2882 = vunpack.c.l.b16 %v2808
        %v2883 = vunpack.c.h.b16 %v2808
        %v2884 = vunpack.c.l.b16 %v2809
        %v2885 = vunpack.c.h.b16 %v2809
        %v2886 = vunpack.c.l.b16 %v2810
        %v2887 = vunpack.c.h.b16 %v2810
        %v2888 = vunpack.c.l.b16 %v2811
        %v2889 = vunpack.c.h.b16 %v2811
        %v2890 = vunpack.c.l.b16 %v2812
        %v2891 = vunpack.c.h.b16 %v2812
        %v2892 = vunpack.c.l.b16 %v2813
        %v2893 = vunpack.c.h.b16 %v2813
        %v2894 = vunpack.c.l.b16 %v2814
        %v2895 = vunpack.c.h.b16 %v2814
        %v2896 = vunpack.c.l.b16 %v2815
        %v2897 = vunpack.c.h.b16 %v2815
        %v2898 = vunpack.c.l.b16 %v2816
        %v2899 = vunpack.c.h.b16 %v2816
        %v2900 = vunpack.c.l.b16 %v2817
        %v2901 = vunpack.c.h.b16 %v2817
        %v2902 = vunpack.c.l.b16 %v2818
        %v2903 = vunpack.c.h.b16 %v2818
        %v2904 = vunpack.c.l.b16 %v2819
        %v2905 = vunpack.c.h.b16 %v2819
        %v2906 = vunpack.c.l.b16 %v2820
        %v2907 = vunpack.c.h.b16 %v2820
        %v2908 = vunpack.c.l.b16 %v2821
        %v2909 = vunpack.c.h.b16 %v2821
        %v2910 = vunpack.c.l.b16 %v2822
        %v2911 = vunpack.c.h.b16 %v2822
        %v2912 = vunpack.c.l.b16 %v2823
        %v2913 = vunpack.c.h.b16 %v2823
        %v2914 = vunpack.c.l.b16 %v2824
        %v2915 = vunpack.c.h.b16 %v2824
        %v2916 = vunpack.c.l.b16 %v2825
        %v2917 = vunpack.c.h.b16 %v2825
        %v2918 = vunpack.c.l.b16 %v2826
        %v2919 = vunpack.c.h.b16 %v2826
        %v2920 = vunpack.c.l.b16 %v2827
        %v2921 = vunpack.c.h.b16 %v2827
        %v2922 = vunpack.c.l.b16 %v2828
        %v2923 = vunpack.c.h.b16 %v2828
        %v2924 = vunpack.c.l.b16 %v2829
        %v2925 = vunpack.c.h.b16 %v2829
        %v2926 = vpack.c.b16 %v2862, %v2862
        %v2927 = vpack.c.b16 %v2863, %v2863
        %v2928 = vpack.c.b16 %v2864, %v2864
        %v2929 = vpack.c.b16 %v2865, %v2865
        %v2930 = vpack.c.b16 %v2866, %v2866
        %v2931 = vpack.c.b16 %v2867, %v2867
        %v2932 = vpack.c.b16 %v2868, %v2868
        %v2933 = vpack.c.b16 %v2869, %v2869
        %v2934 = vpack.c.b16 %v2870, %v2870
        %v2935 = vpack.c.b16 %v2871, %v2871
        %v2936 = vpack.c.b16 %v2872, %v2872
        %v2937 = vpack.c.b16 %v2873, %v2873
        %v2938 = vpack.c.b16 %v2874, %v2874
        %v2939 = vpack.c.b16 %v2875, %v2875
        %v2940 = vpack.c.b16 %v2876, %v2876
        %v2941 = vpack.c.b16 %v2877, %v2877
        %v2942 = vpack.c.b16 %v2878, %v2878
        %v2943 = vpack.c.b16 %v2879, %v2879
        %v2944 = vpack.c.b16 %v2880, %v2880
        %v2945 = vpack.c.b16 %v2881, %v2881
        %v2946 = vpack.c.b16 %v2882, %v2882
        %v2947 = vpack.c.b16 %v2883, %v2883
        %v2948 = vpack.c.b16 %v2884, %v2884
        %v2949 = vpack.c.b16 %v2885, %v2885
        %v2950 = vpack.c.b16 %v2886, %v2886
        %v2951 = vpack.c.b16 %v2887, %v2887
        %v2952 = vpack.c.b16 %v2888, %v2888
        %v2953 = vpack.c.b16 %v2889, %v2889
        %v2954 = vpack.c.b16 %v2890, %v2890
        %v2955 = vpack.c.b16 %v2891, %v2891
        %v2956 = vpack.c.b16 %v2892, %v2892
        %v2957 = vpack.c.b16 %v2893, %v2893
        %v2958 = vpack.c.b16 %v2894, %v2894
        %v2959 = vpack.c.b16 %v2895, %v2895
        %v2960 = vpack.c.b16 %v2896, %v2896
        %v2961 = vpack.c.b16 %v2897, %v2897
        %v2962 = vpack.c.b16 %v2898, %v2898
        %v2963 = vpack.c.b16 %v2899, %v2899
        %v2964 = vpack.c.b16 %v2900, %v2900
        %v2965 = vpack.c.b16 %v2901, %v2901
        %v2966 = vpack.c.b16 %v2902, %v2902
        %v2967 = vpack.c.b16 %v2903, %v2903
        %v2968 = vpack.c.b16 %v2904, %v2904
        %v2969 = vpack.c.b16 %v2905, %v2905
        %v2970 = vpack.c.b16 %v2906, %v2906
        %v2971 = vpack.c.b16 %v2907, %v2907
        %v2972 = vpack.c.b16 %v2908, %v2908
        %v2973 = vpack.c.b16 %v2909, %v2909
        %v2974 = vpack.c.b16 %v2910, %v2910
        %v2975 = vpack.c.b16 %v2911, %v2911
        %v2976 = vpack.c.b16 %v2912, %v2912
        %v2977 = vpack.c.b16 %v2913, %v2913
        %v2978 = vpack.c.b16 %v2914, %v2914
        %v2979 = vpack.c.b16 %v2915, %v2915
        %v2980 = vpack.c.b16 %v2916, %v2916
        %v2981 = vpack.c.b16 %v2917, %v2917
        %v2982 = vpack.c.b16 %v2918, %v2918
        %v2983 = vpack.c.b16 %v2919, %v2919
        %v2984 = vpack.c.b16 %v2920, %v2920
        %v2985 = vpack.c.b16 %v2921, %v2921
        %v2986 = vpack.c.b16 %v2922, %v2922
        %v2987 = vpack.c.b16 %v2923, %v2923
        %v2988 = vpack.c.b16 %v2924, %v2924
        %v2989 = vpack.c.b16 %v2925, %v2925
        %3054 = vst [vmem:[%s240] sm:$0xf] %v2926
        %3055 = vst [vmem:[%s240 + $0x4] sm:$0xf] %v2927
        %3056 = vst [vmem:[%s240 + $0x8] sm:$0xf] %v2928
        %3057 = vst [vmem:[%s240 + $0xc] sm:$0xf] %v2929
        %3058 = vst [vmem:[%s240 + $0x10] sm:$0xf] %v2930
        %3059 = vst [vmem:[%s240 + $0x14] sm:$0xf] %v2931
        %3060 = vst [vmem:[%s240 + $0x18] sm:$0xf] %v2932
        %3061 = vst [vmem:[%s240 + $0x1c] sm:$0xf] %v2933
        %3062 = vst [vmem:[%s240 + $0x20] sm:$0xf] %v2934
        %3063 = vst [vmem:[%s240 + $0x24] sm:$0xf] %v2935
        %3064 = vst [vmem:[%s240 + $0x28] sm:$0xf] %v2936
        %3065 = vst [vmem:[%s240 + $0x2c] sm:$0xf] %v2937
        %3066 = vst [vmem:[%s240 + $0x30] sm:$0xf] %v2938
        %3067 = vst [vmem:[%s240 + $0x34] sm:$0xf] %v2939
        %3068 = vst [vmem:[%s240 + $0x38] sm:$0xf] %v2940
        %3069 = vst [vmem:[%s240 + $0x3c] sm:$0xf] %v2941
        %3070 = vst [vmem:[%s240 + $0x40] sm:$0xf] %v2942
        %3071 = vst [vmem:[%s240 + $0x44] sm:$0xf] %v2943
        %3072 = vst [vmem:[%s240 + $0x48] sm:$0xf] %v2944
        %3073 = vst [vmem:[%s240 + $0x4c] sm:$0xf] %v2945
        %3074 = vst [vmem:[%s240 + $0x50] sm:$0xf] %v2946
        %3075 = vst [vmem:[%s240 + $0x54] sm:$0xf] %v2947
        %3076 = vst [vmem:[%s240 + $0x58] sm:$0xf] %v2948
        %3077 = vst [vmem:[%s240 + $0x5c] sm:$0xf] %v2949
        %3078 = vst [vmem:[%s240 + $0x60] sm:$0xf] %v2950
        %3079 = vst [vmem:[%s240 + $0x64] sm:$0xf] %v2951
        %3080 = vst [vmem:[%s240 + $0x68] sm:$0xf] %v2952
        %3081 = vst [vmem:[%s240 + $0x6c] sm:$0xf] %v2953
        %3082 = vst [vmem:[%s240 + $0x70] sm:$0xf] %v2954
        %3083 = vst [vmem:[%s240 + $0x74] sm:$0xf] %v2955
        %3084 = vst [vmem:[%s240 + $0x78] sm:$0xf] %v2956
        %3085 = vst [vmem:[%s240 + $0x7c] sm:$0xf] %v2957
        %3086 = vst [vmem:[%s240 + $0x80] sm:$0xf] %v2958
        %3087 = vst [vmem:[%s240 + $0x84] sm:$0xf] %v2959
        %3088 = vst [vmem:[%s240 + $0x88] sm:$0xf] %v2960
        %3089 = vst [vmem:[%s240 + $0x8c] sm:$0xf] %v2961
        %3090 = vst [vmem:[%s240 + $0x90] sm:$0xf] %v2962
        %3091 = vst [vmem:[%s240 + $0x94] sm:$0xf] %v2963
        %3092 = vst [vmem:[%s240 + $0x98] sm:$0xf] %v2964
        %3093 = vst [vmem:[%s240 + $0x9c] sm:$0xf] %v2965
        %3094 = vst [vmem:[%s240 + $0xa0] sm:$0xf] %v2966
        %3095 = vst [vmem:[%s240 + $0xa4] sm:$0xf] %v2967
        %3096 = vst [vmem:[%s240 + $0xa8] sm:$0xf] %v2968
        %3097 = vst [vmem:[%s240 + $0xac] sm:$0xf] %v2969
        %3098 = vst [vmem:[%s240 + $0xb0] sm:$0xf] %v2970
        %3099 = vst [vmem:[%s240 + $0xb4] sm:$0xf] %v2971
        %3100 = vst [vmem:[%s240 + $0xb8] sm:$0xf] %v2972
        %3101 = vst [vmem:[%s240 + $0xbc] sm:$0xf] %v2973
        %3102 = vst [vmem:[%s240 + $0xc0] sm:$0xf] %v2974
        %3103 = vst [vmem:[%s240 + $0xc4] sm:$0xf] %v2975
        %3104 = vst [vmem:[%s240 + $0xc8] sm:$0xf] %v2976
        %3105 = vst [vmem:[%s240 + $0xcc] sm:$0xf] %v2977
        %3106 = vst [vmem:[%s240 + $0xd0] sm:$0xf] %v2978
        %3107 = vst [vmem:[%s240 + $0xd4] sm:$0xf] %v2979
        %3108 = vst [vmem:[%s240 + $0xd8] sm:$0xf] %v2980
        %3109 = vst [vmem:[%s240 + $0xdc] sm:$0xf] %v2981
        %3110 = vst [vmem:[%s240 + $0xe0] sm:$0xf] %v2982
        %3111 = vst [vmem:[%s240 + $0xe4] sm:$0xf] %v2983
        %3112 = vst [vmem:[%s240 + $0xe8] sm:$0xf] %v2984
        %3113 = vst [vmem:[%s240 + $0xec] sm:$0xf] %v2985
        %3114 = vst [vmem:[%s240 + $0xf0] sm:$0xf] %v2986
        %3115 = vst [vmem:[%s240 + $0xf4] sm:$0xf] %v2987
        %3116 = vst [vmem:[%s240 + $0xf8] sm:$0xf] %v2988
        %3117 = vst [vmem:[%s240 + $0xfc] sm:$0xf] %v2989
        %s3118 = sand.u32 %s144, 1
        %s3119 = scalar_lea.sflag [#allocation3], %s3118
        %s3120 = sand.u32 %s144, 1
        %s3121 = smul.addr %s3120, 256
        %s3122 = scalar_lea.vmem [#allocation2], %s3121
        // Predicated region
        $region37: #{tpu_custom_call.1} parent=35 // pred_check
          %p3123 = pneg %p154
        $region38: #{tpu_custom_call.1} parent=35 // pred_check_branch
          %3125 = sbr.rel (%p3123) target = $region40
        $region39: #{tpu_custom_call.1} parent=35 // pred_region
          %s3126 = smul.u32 64, %s22
          %s3128 = ssub.s32 4096, 4096
          %3129 = vsyncadd %s3119, %s3128
          %s3130 = sadd.s32 %s23, %s3126
          %s3131 = smul.addr %s3130, 64
          %s3132 = scalar_lea.hbm %s4, %s3131
          %s3133 = sshll.u32 %s3122, 4
          %s3134 = int_to_ptr.vmem [resolvable:$true] %s3133
          %3139 = dma.vmem_to_hbm [thread:$0]  %s3134, 4096, %s3132, %s3119, 64, 64, 4
        $region40: #{tpu_custom_call.1} parent=35 // pred_fallthru
          _
      $region36: #{tpu_custom_call.1} parent=5 // pred_fallthru
        _
      %p3140 = scmp.le.s32.totalorder 2, %s13
      // Predicated region
      $region41: #{tpu_custom_call.1} parent=5 // pred_check
        %p3141 = pneg %p3140
      $region42: #{tpu_custom_call.1} parent=5 // pred_check_branch
        %3143 = sbr.rel (%p3141) target = $region44
      $region43: #{tpu_custom_call.1} parent=5 // pred_region
        %s3144 = ssub.s32 %s13, 2
        // Predicated region
        $region45: #{tpu_custom_call.1} parent=43 // pred_check
          %p3145 = pneg %p160
        $region46: #{tpu_custom_call.1} parent=43 // pred_check_branch
          %3147 = sbr.rel (%p3145) target = $region48
        $region47: #{tpu_custom_call.1} parent=43 // pred_region
          %s3148 = sand.u32 %s145, 1
          %s3149 = scalar_lea.sflag [#allocation3], %s3148
          %s3150 = sand.u32 %s145, 1
          %s3151 = smul.addr %s3150, 256
          %s3152 = scalar_lea.vmem [#allocation2], %s3151
          %3153 = dma.done %s3149, 4096
        $region48: #{tpu_custom_call.1} parent=43 // pred_fallthru
          _
      $region44: #{tpu_custom_call.1} parent=5 // pred_fallthru
        _
    $region6: #{tpu_custom_call.1} parent=1 // loop_footer
      %s17 = sadd.s32 1, %s13
    $region7: #{tpu_custom_call.1} parent=1 // loop_footer_branch
      %12 = sbr.rel target = $region3
    $region8: #{tpu_custom_call.1} parent=1 // loop_exit
      _
    %3154 = vsyncpa [#allocation3], 1
    %s3155 = scalar_lea.sflag [#allocation3], 1
    %3156 = vsyncpa %s3155, 1

</llo_original>
